<compile_context>
chip_gen: v5e
topology: v5e:2x2
jax: 0.10.0
libtpu: 0.0.40
codegen_flags: <defaults>
</compile_context>

<pallas_src>
import math
import numpy as np
import jax
import jax.numpy as jnp
from jax.experimental import pallas as pl
from jax.experimental.pallas import tpu as pltpu


def _criss_cross_mask(H, W):
    """(HW, HW) {0,1} mask: query p=(y,x) attends to keys on the same row OR same column.

    The union counts the self position once, which matches the CUDA ca_weight kernel (self lives
    in the row part; the column loop skips i == y), so a masked softmax over this support equals
    F.softmax over the (H+W-1)-long criss-cross axis.
    """
    idx = np.arange(H * W)
    rows = idx // W
    cols = idx % W
    same_row = rows[:, None] == rows[None, :]
    same_col = cols[:, None] == cols[None, :]
    return (same_row | same_col).astype(np.float32)


def _ca_kernel(x_ref, mask_ref, tw_ref, tb_ref, fw_ref, fb_ref, gw_ref, gb_ref,
               iw_ref, ib_ref, out_ref, att_ref):
    f32 = jnp.float32
    xb = x_ref[0]                                               # (C_in, HW), lane-dense

    # 1x1 convolutions == channel matmuls (MXU).
    t = jnp.dot(tw_ref[...], xb, preferred_element_type=f32) + tb_ref[...]   # (C_inner, HW)
    f = jnp.dot(fw_ref[...], xb, preferred_element_type=f32) + fb_ref[...]   # (C_inner, HW)
    g = jnp.dot(gw_ref[...], xb, preferred_element_type=f32) + gb_ref[...]   # (C_out,  HW)

    # ca_weight: dense affinity A[p, q] = sum_c t[c, p] * f[c, q]  ->  (HW, HW) MXU matmul.
    a = jax.lax.dot_general(t, f, dimension_numbers=(((0,), (0,)), ((), ())),
                            preferred_element_type=f32)

    # Masked softmax over the criss-cross support (equivalent to softmax over the H+W-1 axis).
    mask = mask_ref[...]                                        # (HW, HW) {0, 1}
    logits = jnp.where(mask > 0.0, a, jnp.float32(-1e30))
    m = jnp.max(logits, axis=1, keepdims=True)
    e = jnp.exp(logits - m) * mask
    denom = jnp.sum(e, axis=1, keepdims=True)
    p = e * pl.reciprocal(denom)                                # (HW, HW), rows sum to 1 on support

    # ca_map: att[c, p] = sum_q p[p, q] * g[c, q]  ->  (C_out, HW) MXU matmul.
    att = jax.lax.dot_general(g, p, dimension_numbers=(((1,), (1,)), ((), ())),
                              preferred_element_type=f32)
    att_ref[0] = att.astype(att_ref.dtype)

    # residual: x + inc(att)   (inc is zero-initialized in the module, kept general here)
    y = jnp.dot(iw_ref[...], att, preferred_element_type=f32) + ib_ref[...]  # (C_in, HW)
    out_ref[0] = (xb + y).astype(out_ref.dtype)


def cross_attention_forward(x, t_w, t_b, f_w, f_b, g_w, g_b, inc_w, inc_b):
    B, C_in, H, W = x.shape
    C_inner = t_w.shape[0]
    C_out = g_w.shape[0]
    HW = H * W

    x_flat = x.reshape(B, C_in, HW).astype(jnp.float32)
    mask = jnp.asarray(_criss_cross_mask(H, W))                 # built once in the wrapper

    col = lambda b: jnp.asarray(b, jnp.float32).reshape(-1, 1)
    const2d = lambda shape: pl.BlockSpec(shape, lambda b: (0, 0))

    out_flat, att_flat = pl.pallas_call(
        _ca_kernel,
        grid=(B,),
        in_specs=[
            pl.BlockSpec((1, C_in, HW), lambda b: (b, 0, 0)),   # x slab per batch element
            const2d((HW, HW)),                                  # criss-cross mask (block revisited)
            const2d((C_inner, C_in)), const2d((C_inner, 1)),    # t conv weight / bias
            const2d((C_inner, C_in)), const2d((C_inner, 1)),    # f conv weight / bias
            const2d((C_out, C_in)),  const2d((C_out, 1)),       # g conv weight / bias
            const2d((C_in, C_out)),  const2d((C_in, 1)),        # inc conv weight / bias
        ],
        out_specs=(
            pl.BlockSpec((1, C_in, HW), lambda b: (b, 0, 0)),   # final residual output
            pl.BlockSpec((1, C_out, HW), lambda b: (b, 0, 0)),  # attention aggregation (pre-inc)
        ),
        out_shape=(
            jax.ShapeDtypeStruct((B, C_in, HW), jnp.float32),
            jax.ShapeDtypeStruct((B, C_out, HW), jnp.float32),
        ),
        compiler_params=pltpu.CompilerParams(
            dimension_semantics=("parallel",)),                 # batch elems independent (v7x 2 TCs)
    )(x_flat, mask,
      t_w.astype(jnp.float32), col(t_b),
      f_w.astype(jnp.float32), col(f_b),
      g_w.astype(jnp.float32), col(g_b),
      inc_w.astype(jnp.float32), col(inc_b))

    return out_flat.reshape(B, C_in, H, W), att_flat.reshape(B, C_out, H, W)


class CrossAttention:
    """JAX/Pallas equivalent of the PyTorch CrossAttention module's forward pass."""
    # TODO(synk): backward passes of CA_Weight / CA_Map are out of scope (forward only).

    def __init__(self, dim_in, dim_inner, dim_out, key):
        k1, k2, k3, k4, k5, k6 = jax.random.split(key, 6)
        s = 1.0 / math.sqrt(dim_in)
        self.t_w = jax.random.normal(k1, (dim_inner, dim_in), jnp.float32) * s
        self.t_b = jax.random.normal(k2, (dim_inner,), jnp.float32) * 0.1
        self.f_w = jax.random.normal(k3, (dim_inner, dim_in), jnp.float32) * s
        self.f_b = jax.random.normal(k4, (dim_inner,), jnp.float32) * 0.1
        self.g_w = jax.random.normal(k5, (dim_out, dim_in), jnp.float32) * s
        self.g_b = jax.random.normal(k6, (dim_out,), jnp.float32) * 0.1
        self.inc_w = jnp.zeros((dim_in, dim_out), jnp.float32)  # nn.init.constant_(weight, 0)
        self.inc_b = jnp.zeros((dim_in,), jnp.float32)          # nn.init.constant_(bias, 0)

    def __call__(self, x):
        out, _ = cross_attention_forward(x, self.t_w, self.t_b, self.f_w, self.f_b,
                                         self.g_w, self.g_b, self.inc_w, self.inc_b)
        return out


def cross_attention_ref(x, t_w, t_b, f_w, f_b, g_w, g_b, inc_w, inc_b):
    """Pure numpy reference mirroring ca_forward_cuda / softmax / ca_map_forward_cuda."""
    x = np.asarray(x, np.float64)
    conv = lambda inp, w, b: (np.einsum('oc,bchw->bohw', np.asarray(w, np.float64), inp)
                              + np.asarray(b, np.float64)[None, :, None, None])
    t = conv(x, t_w, t_b)
    f = conv(x, f_w, f_b)
    g = conv(x, g_w, g_b)
    B, _, H, W = x.shape
    C_out = g.shape[1]
    L = H + W - 1
    weight = np.zeros((B, L, H, W), np.float64)
    for b in range(B):
        for y in range(H):
            for xx in range(W):
                tv = t[b, :, y, xx]
                weight[b, :W, y, xx] = tv @ f[b, :, y, :]           # row part (includes self)
                colv = tv @ f[b, :, :, xx]                          # column part (skips i == y)
                for i in range(H):
                    if i == y:
                        continue
                    j = i if i < y else i - 1
                    weight[b, W + j, y, xx] = colv[i]
    wmax = weight.max(axis=1, keepdims=True)
    e = np.exp(weight - wmax)
    sm = e / e.sum(axis=1, keepdims=True)
    att = np.zeros((B, C_out, H, W), np.float64)
    for b in range(B):
        for y in range(H):
            for xx in range(W):
                acc = g[b, :, y, :] @ sm[b, :W, y, xx]
                for i in range(H):
                    if i == y:
                        continue
                    j = i if i < y else i - 1
                    acc = acc + sm[b, W + j, y, xx] * g[b, :, i, xx]
                att[b, :, y, xx] = acc
    final = x + conv(att, inc_w, inc_b)
    return final.astype(np.float32), att.astype(np.float32)


if __name__ == "__main__":
    B, dim_in, dim_inner, dim_out, H, W = 2, 8, 8, 8, 16, 16

    key = jax.random.PRNGKey(0)
    kx, kp = jax.random.split(key)
    x = jax.random.normal(kx, (B, dim_in, H, W), jnp.float32)

    mod = CrossAttention(dim_in, dim_inner, dim_out, kp)

    out, att = cross_attention_forward(x, mod.t_w, mod.t_b, mod.f_w, mod.f_b,
                                       mod.g_w, mod.g_b, mod.inc_w, mod.inc_b)
    out, att = jax.block_until_ready((out, att))

    ref_out, ref_att = cross_attention_ref(np.asarray(x), mod.t_w, mod.t_b, mod.f_w, mod.f_b,
                                           mod.g_w, mod.g_b, mod.inc_w, mod.inc_b)

    assert out.shape == (B, dim_in, H, W)
    assert att.shape == (B, dim_out, H, W)
    att_err = float(np.max(np.abs(np.asarray(att) - ref_att)))
    out_err = float(np.max(np.abs(np.asarray(out) - ref_out)))
    assert np.allclose(np.asarray(att), ref_att, atol=1e-3, rtol=1e-3), f"att max abs err {att_err}"
    assert np.allclose(np.asarray(out), ref_out, atol=1e-3, rtol=1e-3), f"out max abs err {out_err}"
    # inc is zero-initialized, so the module output must equal its input exactly.
    assert np.allclose(np.asarray(out), np.asarray(x), atol=1e-6), "residual path mismatch"
    print("KERNEL_OK")
</pallas_src>

<mosaic_0001>
module attributes {stable_mosaic.version = 11 : i64} {
  func.func @_ca_kernel(%arg0: i32, %arg1: memref<1x8x256xf32, #tpu.memory_space<vmem>>, %arg2: memref<256x256xf32, #tpu.memory_space<vmem>>, %arg3: memref<8x8xf32, #tpu.memory_space<vmem>>, %arg4: memref<8x1xf32, #tpu.memory_space<vmem>>, %arg5: memref<8x8xf32, #tpu.memory_space<vmem>>, %arg6: memref<8x1xf32, #tpu.memory_space<vmem>>, %arg7: memref<8x8xf32, #tpu.memory_space<vmem>>, %arg8: memref<8x1xf32, #tpu.memory_space<vmem>>, %arg9: memref<8x8xf32, #tpu.memory_space<vmem>>, %arg10: memref<8x1xf32, #tpu.memory_space<vmem>>, %arg11: memref<1x8x256xf32, #tpu.memory_space<vmem>>, %arg12: memref<1x8x256xf32, #tpu.memory_space<vmem>>) attributes {dimension_semantics = [#tpu.dimension_semantics<parallel>], iteration_bounds = array<i64: 2>, scalar_prefetch = 0 : i64, scratch_operands = 0 : i64, tpu.core_type = #tpu.core_type<tc>, window_params = [{transform_indices = @transform_0, window_bounds = array<i64: 1, 8, 256>}, {pipeline_mode = #tpu.pipeline_mode<synchronous>, transform_indices = @transform_1, window_bounds = array<i64: 256, 256>}, {pipeline_mode = #tpu.pipeline_mode<synchronous>, transform_indices = @transform_2, window_bounds = array<i64: 8, 8>}, {pipeline_mode = #tpu.pipeline_mode<synchronous>, transform_indices = @transform_3, window_bounds = array<i64: 8, 1>}, {pipeline_mode = #tpu.pipeline_mode<synchronous>, transform_indices = @transform_4, window_bounds = array<i64: 8, 8>}, {pipeline_mode = #tpu.pipeline_mode<synchronous>, transform_indices = @transform_5, window_bounds = array<i64: 8, 1>}, {pipeline_mode = #tpu.pipeline_mode<synchronous>, transform_indices = @transform_6, window_bounds = array<i64: 8, 8>}, {pipeline_mode = #tpu.pipeline_mode<synchronous>, transform_indices = @transform_7, window_bounds = array<i64: 8, 1>}, {pipeline_mode = #tpu.pipeline_mode<synchronous>, transform_indices = @transform_8, window_bounds = array<i64: 8, 8>}, {pipeline_mode = #tpu.pipeline_mode<synchronous>, transform_indices = @transform_9, window_bounds = array<i64: 8, 1>}, {transform_indices = @transform_10, window_bounds = array<i64: 1, 8, 256>}, {transform_indices = @transform_11, window_bounds = array<i64: 1, 8, 256>}]} {
    %c0 = arith.constant 0 : index
    %c0_0 = arith.constant 0 : index
    %c0_1 = arith.constant 0 : index
    %0 = vector.load %arg1[%c0, %c0_0, %c0_1] : memref<1x8x256xf32, #tpu.memory_space<vmem>>, vector<1x8x256xf32>
    %1 = vector.shape_cast %0 : vector<1x8x256xf32> to vector<8x256xf32>
    %c0_2 = arith.constant 0 : index
    %c0_3 = arith.constant 0 : index
    %2 = vector.load %arg3[%c0_2, %c0_3] : memref<8x8xf32, #tpu.memory_space<vmem>>, vector<8x8xf32>
    %cst = arith.constant dense<0.000000e+00> : vector<8x256xf32>
    %3 = tpu.matmul %2, %1, %cst {dimension_numbers = #tpu.dot_dimension_numbers<[1], [0], [0], [1], [0, 0, 1, 1], [], []>} : vector<8x8xf32>, vector<8x256xf32>, vector<8x256xf32> -> vector<8x256xf32>
    %c0_4 = arith.constant 0 : index
    %c0_5 = arith.constant 0 : index
    %4 = vector.load %arg4[%c0_4, %c0_5] : memref<8x1xf32, #tpu.memory_space<vmem>>, vector<8x1xf32>
    %5 = vector.broadcast %4 : vector<8x1xf32> to vector<8x256xf32>
    %6 = arith.addf %3, %5 : vector<8x256xf32>
    %c0_6 = arith.constant 0 : index
    %c0_7 = arith.constant 0 : index
    %7 = vector.load %arg5[%c0_6, %c0_7] : memref<8x8xf32, #tpu.memory_space<vmem>>, vector<8x8xf32>
    %cst_8 = arith.constant dense<0.000000e+00> : vector<8x256xf32>
    %8 = tpu.matmul %7, %1, %cst_8 {dimension_numbers = #tpu.dot_dimension_numbers<[1], [0], [0], [1], [0, 0, 1, 1], [], []>} : vector<8x8xf32>, vector<8x256xf32>, vector<8x256xf32> -> vector<8x256xf32>
    %c0_9 = arith.constant 0 : index
    %c0_10 = arith.constant 0 : index
    %9 = vector.load %arg6[%c0_9, %c0_10] : memref<8x1xf32, #tpu.memory_space<vmem>>, vector<8x1xf32>
    %10 = vector.broadcast %9 : vector<8x1xf32> to vector<8x256xf32>
    %11 = arith.addf %8, %10 : vector<8x256xf32>
    %c0_11 = arith.constant 0 : index
    %c0_12 = arith.constant 0 : index
    %12 = vector.load %arg7[%c0_11, %c0_12] : memref<8x8xf32, #tpu.memory_space<vmem>>, vector<8x8xf32>
    %cst_13 = arith.constant dense<0.000000e+00> : vector<8x256xf32>
    %13 = tpu.matmul %12, %1, %cst_13 {dimension_numbers = #tpu.dot_dimension_numbers<[1], [0], [0], [1], [0, 0, 1, 1], [], []>} : vector<8x8xf32>, vector<8x256xf32>, vector<8x256xf32> -> vector<8x256xf32>
    %c0_14 = arith.constant 0 : index
    %c0_15 = arith.constant 0 : index
    %14 = vector.load %arg8[%c0_14, %c0_15] : memref<8x1xf32, #tpu.memory_space<vmem>>, vector<8x1xf32>
    %15 = vector.broadcast %14 : vector<8x1xf32> to vector<8x256xf32>
    %16 = arith.addf %13, %15 : vector<8x256xf32>
    %cst_16 = arith.constant dense<0.000000e+00> : vector<256x256xf32>
    %17 = tpu.matmul %6, %11, %cst_16 {dimension_numbers = #tpu.dot_dimension_numbers<[0], [0], [1], [1], [0, 1, 1, 1], [], []>} : vector<8x256xf32>, vector<8x256xf32>, vector<256x256xf32> -> vector<256x256xf32>
    %c0_17 = arith.constant 0 : index
    %c0_18 = arith.constant 0 : index
    %18 = vector.load %arg2[%c0_17, %c0_18] : memref<256x256xf32, #tpu.memory_space<vmem>>, vector<256x256xf32>
    %cst_19 = arith.constant 0.000000e+00 : f32
    %19 = vector.broadcast %cst_19 : f32 to vector<256x256xf32>
    %20 = arith.cmpf ogt, %18, %19 : vector<256x256xf32>
    %cst_20 = arith.constant -1.000000e+30 : f32
    %21 = vector.broadcast %cst_20 : f32 to vector<256x256xf32>
    %22 = arith.select %20, %17, %21 : vector<256x256xi1>, vector<256x256xf32>
    %cst_21 = arith.constant dense<0xFF800000> : vector<256xf32>
    %23 = vector.multi_reduction <maximumf>, %22, %cst_21 [1] : vector<256x256xf32> to vector<256xf32>
    %24 = vector.shape_cast %23 : vector<256xf32> to vector<256x1xf32>
    %25 = vector.broadcast %24 : vector<256x1xf32> to vector<256x256xf32>
    %26 = arith.subf %22, %25 : vector<256x256xf32>
    %27 = math.exp %26 : vector<256x256xf32>
    %28 = arith.mulf %27, %18 : vector<256x256xf32>
    %cst_22 = arith.constant dense<0.000000e+00> : vector<256xf32>
    %29 = vector.multi_reduction <add>, %28, %cst_22 [1] : vector<256x256xf32> to vector<256xf32>
    %30 = vector.shape_cast %29 : vector<256xf32> to vector<256x1xf32>
    %31 = tpu.reciprocal %30 : vector<256x1xf32> -> vector<256x1xf32>
    %32 = vector.broadcast %31 : vector<256x1xf32> to vector<256x256xf32>
    %33 = arith.mulf %28, %32 : vector<256x256xf32>
    %cst_23 = arith.constant dense<0.000000e+00> : vector<8x256xf32>
    %34 = tpu.matmul %16, %33, %cst_23 {dimension_numbers = #tpu.dot_dimension_numbers<[1], [1], [0], [0], [0, 0, 1, 0], [], []>} : vector<8x256xf32>, vector<256x256xf32>, vector<8x256xf32> -> vector<8x256xf32>
    %c0_24 = arith.constant 0 : index
    %c0_25 = arith.constant 0 : index
    %c0_26 = arith.constant 0 : index
    %35 = vector.load %arg12[%c0_24, %c0_25, %c0_26] : memref<1x8x256xf32, #tpu.memory_space<vmem>>, vector<1x8x256xf32>
    %36 = vector.shape_cast %35 : vector<1x8x256xf32> to vector<8x256xf32>
    %37 = vector.shape_cast %34 : vector<8x256xf32> to vector<1x8x256xf32>
    tpu.vector_store %arg12[%c0_24, %c0_25, %c0_26], %37 {strides = array<i32>} : memref<1x8x256xf32, #tpu.memory_space<vmem>>, vector<1x8x256xf32>,
    %c0_27 = arith.constant 0 : index
    %c0_28 = arith.constant 0 : index
    %38 = vector.load %arg9[%c0_27, %c0_28] : memref<8x8xf32, #tpu.memory_space<vmem>>, vector<8x8xf32>
    %cst_29 = arith.constant dense<0.000000e+00> : vector<8x256xf32>
    %39 = tpu.matmul %38, %34, %cst_29 {dimension_numbers = #tpu.dot_dimension_numbers<[1], [0], [0], [1], [0, 0, 1, 1], [], []>} : vector<8x8xf32>, vector<8x256xf32>, vector<8x256xf32> -> vector<8x256xf32>
    %c0_30 = arith.constant 0 : index
    %c0_31 = arith.constant 0 : index
    %40 = vector.load %arg10[%c0_30, %c0_31] : memref<8x1xf32, #tpu.memory_space<vmem>>, vector<8x1xf32>
    %41 = vector.broadcast %40 : vector<8x1xf32> to vector<8x256xf32>
    %42 = arith.addf %39, %41 : vector<8x256xf32>
    %43 = arith.addf %1, %42 : vector<8x256xf32>
    %c0_32 = arith.constant 0 : index
    %c0_33 = arith.constant 0 : index
    %c0_34 = arith.constant 0 : index
    %44 = vector.load %arg11[%c0_32, %c0_33, %c0_34] : memref<1x8x256xf32, #tpu.memory_space<vmem>>, vector<1x8x256xf32>
    %45 = vector.shape_cast %44 : vector<1x8x256xf32> to vector<8x256xf32>
    %46 = vector.shape_cast %43 : vector<8x256xf32> to vector<1x8x256xf32>
    tpu.vector_store %arg11[%c0_32, %c0_33, %c0_34], %46 {strides = array<i32>} : memref<1x8x256xf32, #tpu.memory_space<vmem>>, vector<1x8x256xf32>,
    return
  }
  func.func @transform_0(%arg0: i32) -> (i32, i32, i32) {
    %c0_i32 = arith.constant 0 : i32
    %c0_i32_0 = arith.constant 0 : i32
    %c0_i32_1 = arith.constant 0 : i32
    return %arg0, %c0_i32, %c0_i32_0 : i32, i32, i32
  }
  func.func @transform_1(%arg0: i32) -> (i32, i32) {
    %c0_i32 = arith.constant 0 : i32
    %c0_i32_0 = arith.constant 0 : i32
    %c0_i32_1 = arith.constant 0 : i32
    return %c0_i32, %c0_i32_0 : i32, i32
  }
  func.func @transform_2(%arg0: i32) -> (i32, i32) {
    %c0_i32 = arith.constant 0 : i32
    %c0_i32_0 = arith.constant 0 : i32
    %c0_i32_1 = arith.constant 0 : i32
    return %c0_i32, %c0_i32_0 : i32, i32
  }
  func.func @transform_3(%arg0: i32) -> (i32, i32) {
    %c0_i32 = arith.constant 0 : i32
    %c0_i32_0 = arith.constant 0 : i32
    %c0_i32_1 = arith.constant 0 : i32
    return %c0_i32, %c0_i32_0 : i32, i32
  }
  func.func @transform_4(%arg0: i32) -> (i32, i32) {
    %c0_i32 = arith.constant 0 : i32
    %c0_i32_0 = arith.constant 0 : i32
    %c0_i32_1 = arith.constant 0 : i32
    return %c0_i32, %c0_i32_0 : i32, i32
  }
  func.func @transform_5(%arg0: i32) -> (i32, i32) {
    %c0_i32 = arith.constant 0 : i32
    %c0_i32_0 = arith.constant 0 : i32
    %c0_i32_1 = arith.constant 0 : i32
    return %c0_i32, %c0_i32_0 : i32, i32
  }
  func.func @transform_6(%arg0: i32) -> (i32, i32) {
    %c0_i32 = arith.constant 0 : i32
    %c0_i32_0 = arith.constant 0 : i32
    %c0_i32_1 = arith.constant 0 : i32
    return %c0_i32, %c0_i32_0 : i32, i32
  }
  func.func @transform_7(%arg0: i32) -> (i32, i32) {
    %c0_i32 = arith.constant 0 : i32
    %c0_i32_0 = arith.constant 0 : i32
    %c0_i32_1 = arith.constant 0 : i32
    return %c0_i32, %c0_i32_0 : i32, i32
  }
  func.func @transform_8(%arg0: i32) -> (i32, i32) {
    %c0_i32 = arith.constant 0 : i32
    %c0_i32_0 = arith.constant 0 : i32
    %c0_i32_1 = arith.constant 0 : i32
    return %c0_i32, %c0_i32_0 : i32, i32
  }
  func.func @transform_9(%arg0: i32) -> (i32, i32) {
    %c0_i32 = arith.constant 0 : i32
    %c0_i32_0 = arith.constant 0 : i32
    %c0_i32_1 = arith.constant 0 : i32
    return %c0_i32, %c0_i32_0 : i32, i32
  }
  func.func @transform_10(%arg0: i32) -> (i32, i32, i32) {
    %c0_i32 = arith.constant 0 : i32
    %c0_i32_0 = arith.constant 0 : i32
    %c0_i32_1 = arith.constant 0 : i32
    return %arg0, %c0_i32, %c0_i32_0 : i32, i32, i32
  }
  func.func @transform_11(%arg0: i32) -> (i32, i32, i32) {
    %c0_i32 = arith.constant 0 : i32
    %c0_i32_0 = arith.constant 0 : i32
    %c0_i32_1 = arith.constant 0 : i32
    return %arg0, %c0_i32, %c0_i32_0 : i32, i32, i32
  }
}

</mosaic_0001>

<llo_original>
// kernel: tpu_custom_call.1
$region0: #{tpu_custom_call.1}
  #allocation0 [shape = 'u32[]', space=smem, size = 0x4, offset = 0x4, fixed_abs, tag = 'smem constant byte address 0x4 - core index']
  #allocation1 [shape = 'u32[72,128]{1,0:T(1,128)}', space=vmem, size = 0x9000, scoped, tag = 'internal scratch']
  %s0 = inlined_call_operand.hbm [shape: f32[2,8,256], index: 0, kind: input, shape index: {}]
  %s1 = inlined_call_operand.hbm [shape: f32[256,256], index: 1, kind: input, shape index: {}]
  %s2 = inlined_call_operand.vmem [shape: f32[8,8], index: 2, kind: input, shape index: {}]
  %s3 = inlined_call_operand.vmem [shape: f32[8,1], index: 3, kind: input, shape index: {}]
  %s4 = inlined_call_operand.vmem [shape: f32[8,8], index: 4, kind: input, shape index: {}]
  %s5 = inlined_call_operand.vmem [shape: f32[8,1], index: 5, kind: input, shape index: {}]
  %s6 = inlined_call_operand.vmem [shape: f32[8,8], index: 6, kind: input, shape index: {}]
  %s7 = inlined_call_operand.vmem [shape: f32[8,1], index: 7, kind: input, shape index: {}]
  %s8 = inlined_call_operand.vmem [shape: f32[8,8], index: 8, kind: input, shape index: {}]
  %s9 = inlined_call_operand.vmem [shape: f32[8,1], index: 9, kind: input, shape index: {}]
  %s10 = inlined_call_operand.hbm [shape: f32[2,8,256], index: 10, kind: output, shape index: {0}]
  %s11 = inlined_call_operand.hbm [shape: f32[2,8,256], index: 11, kind: output, shape index: {1}]
  %12 = xla_tuple %s10, %s11
  %s13 = sld [smem:[#allocation0]]
  $region89: #{tpu_custom_call.1} parent=0
    _
  %s15 = ssub.s32 1, %s13
  %s16 = scalar_select 0, %s15, %s13
  $region1: #{tpu_custom_call.1} parent=0
    #allocation2 [shape = 'u8[16384]{0}', space=vmem, size = 0x4000, scoped, tag = 'input window, operand 0']
    #allocation3 [shape = 's32[2]{0}', space=sflag, size = 0x8, scoped, tag = 'scoped memory for tpu_custom_call.1']
    #allocation4 [shape = 's32[2]{0}', space=sflag, size = 0x8, scoped, tag = 'scoped memory for tpu_custom_call.1']
    #allocation5 [shape = 'u8[262144]{0}', space=vmem, size = 0x40000, scoped, tag = 'input window, operand 1, single buffered']
    #allocation6 [shape = 's32[1]{0}', space=sflag, size = 0x4, scoped, tag = 'scoped memory for tpu_custom_call.1']
    #allocation7 [shape = 'u8[16384]{0}', space=vmem, size = 0x4000, scoped, tag = 'output window, operand 0']
    #allocation8 [shape = 'u8[16384]{0}', space=vmem, size = 0x4000, scoped, tag = 'output window, operand 1']
    #allocation9 [shape = 's32[2]{0}', space=sflag, size = 0x8, scoped, tag = 'scoped memory for tpu_custom_call.1']
    %17 = vsyncpa [#allocation3], 0
    %s18 = scalar_lea.sflag [#allocation3], 1
    %19 = vsyncpa %s18, 0
    %20 = vsyncpa [#allocation6], 0
    %21 = vsyncpa [#allocation4], 0
    %s22 = scalar_lea.sflag [#allocation4], 1
    %23 = vsyncpa %s22, 0
    %24 = vsyncpa [#allocation9], 0
    %s25 = scalar_lea.sflag [#allocation9], 1
    %26 = vsyncpa %s25, 0
    loop: start=0, step=1, limit=4
    $region2: #{tpu_custom_call.1} parent=1 // loop_pre_header
      _
    $region3: #{tpu_custom_call.1} parent=1 // loop_header
      %s28 = sphi 0, %s32
      %p29 = scmp.ge.s32.totalorder %s28, 4
      %s38 = sphi 0, %s40
      %s41 = sphi 0, %s38
      %s42 = sphi 0, %s41
      %s58 = sphi 0, %s42
      %s62 = sphi 0, %s62
      %s64 = sphi 0, %s62
      %s65 = sphi 0, %s64
      %s79 = sphi 0, %s65
      %s83 = sphi 0, %s83
      %s85 = sphi 0, %s83
      %s86 = sphi 0, %s85
      %s100 = sphi 0, %s86
      %s104 = sphi 0, %s104
      %s106 = sphi 0, %s104
      %s107 = sphi 0, %s106
      %s121 = sphi 0, %s107
      %s125 = sphi 0, %s125
      %s127 = sphi 0, %s125
      %s128 = sphi 0, %s127
      %s142 = sphi 0, %s128
      %s146 = sphi 0, %s146
      %s148 = sphi 0, %s146
      %s149 = sphi 0, %s148
      %s163 = sphi 0, %s149
      %s167 = sphi 0, %s167
      %s169 = sphi 0, %s167
      %s170 = sphi 0, %s169
      %s184 = sphi 0, %s170
      %s188 = sphi 0, %s188
      %s190 = sphi 0, %s188
      %s191 = sphi 0, %s190
      %s205 = sphi 0, %s191
      %s209 = sphi 0, %s209
      %s211 = sphi 0, %s209
      %s212 = sphi 0, %s211
      %s226 = sphi 0, %s212
      %s230 = sphi 0, %s230
      %s232 = sphi 0, %s230
      %s233 = sphi 0, %s232
      %s247 = sphi 0, %s233
      %s253 = sphi 0, %s255
      %s256 = sphi 0, %s253
      %s257 = sphi 0, %s256
      %s273 = sphi 0, %s257
      %s279 = sphi 0, %s281
      %s282 = sphi 0, %s279
      %s283 = sphi 0, %s282
      %s299 = sphi 0, %s283
    $region4: #{tpu_custom_call.1} parent=1 // loop_header_branch
      %31 = sbr.rel (%p29) target = $region8
    $region5: #{tpu_custom_call.1} parent=1 // loop_body
      %s33 = ssub.s32 %s28, 1
      %s34 = ssub.s32 %s28, 2
      %s35 = sadd.s32 %s28, 1
      %s36 = ssub.s32 %s28, %s35
      %p37 = scmp.eq.s32.totalorder %s36, 0
      %s39 = sadd.s32 %s38, 1
      %s40 = scalar_select %p37, %s38, %s39
      %p43 = pneg %p37
      %p44 = scmp.eq.s32.totalorder %s28, 1
      %p45 = por %p43, %p44
      %p46 = scmp.ne.s32.totalorder %s38, %s41
      %p47 = scmp.eq.s32.totalorder %s28, 0
      %p48 = por %p46, %p47
      %p49 = scmp.ne.s32.totalorder %s38, %s41
      %p50 = scmp.eq.s32.totalorder %s33, 1
      %p51 = por %p49, %p50
      %p52 = scmp.ne.s32.totalorder %s41, %s42
      %p53 = scmp.eq.s32.totalorder %s33, 0
      %p54 = por %p52, %p53
      %p55 = scmp.ne.s32.totalorder %s41, %s42
      %p56 = scmp.eq.s32.totalorder %s34, 1
      %p57 = por %p55, %p56
      %p59 = scmp.ne.s32.totalorder %s42, %s58
      %p60 = scmp.eq.s32.totalorder %s34, 0
      %p61 = por %p59, %p60
      %s63 = sadd.s32 %s62, 1
      %p66 = scmp.eq.s32.totalorder %s28, 1
      %p67 = scmp.ne.s32.totalorder %s62, %s64
      %p68 = scmp.eq.s32.totalorder %s28, 0
      %p69 = por %p67, %p68
      %p70 = scmp.ne.s32.totalorder %s62, %s64
      %p71 = scmp.eq.s32.totalorder %s33, 1
      %p72 = por %p70, %p71
      %p73 = scmp.ne.s32.totalorder %s64, %s65
      %p74 = scmp.eq.s32.totalorder %s33, 0
      %p75 = por %p73, %p74
      %p76 = scmp.ne.s32.totalorder %s64, %s65
      %p77 = scmp.eq.s32.totalorder %s34, 1
      %p78 = por %p76, %p77
      %p80 = scmp.ne.s32.totalorder %s65, %s79
      %p81 = scmp.eq.s32.totalorder %s34, 0
      %p82 = por %p80, %p81
      %s84 = sadd.s32 %s83, 1
      %p87 = scmp.eq.s32.totalorder %s28, 1
      %p88 = scmp.ne.s32.totalorder %s83, %s85
      %p89 = scmp.eq.s32.totalorder %s28, 0
      %p90 = por %p88, %p89
      %p91 = scmp.ne.s32.totalorder %s83, %s85
      %p92 = scmp.eq.s32.totalorder %s33, 1
      %p93 = por %p91, %p92
      %p94 = scmp.ne.s32.totalorder %s85, %s86
      %p95 = scmp.eq.s32.totalorder %s33, 0
      %p96 = por %p94, %p95
      %p97 = scmp.ne.s32.totalorder %s85, %s86
      %p98 = scmp.eq.s32.totalorder %s34, 1
      %p99 = por %p97, %p98
      %p101 = scmp.ne.s32.totalorder %s86, %s100
      %p102 = scmp.eq.s32.totalorder %s34, 0
      %p103 = por %p101, %p102
      %s105 = sadd.s32 %s104, 1
      %p108 = scmp.eq.s32.totalorder %s28, 1
      %p109 = scmp.ne.s32.totalorder %s104, %s106
      %p110 = scmp.eq.s32.totalorder %s28, 0
      %p111 = por %p109, %p110
      %p112 = scmp.ne.s32.totalorder %s104, %s106
      %p113 = scmp.eq.s32.totalorder %s33, 1
      %p114 = por %p112, %p113
      %p115 = scmp.ne.s32.totalorder %s106, %s107
      %p116 = scmp.eq.s32.totalorder %s33, 0
      %p117 = por %p115, %p116
      %p118 = scmp.ne.s32.totalorder %s106, %s107
      %p119 = scmp.eq.s32.totalorder %s34, 1
      %p120 = por %p118, %p119
      %p122 = scmp.ne.s32.totalorder %s107, %s121
      %p123 = scmp.eq.s32.totalorder %s34, 0
      %p124 = por %p122, %p123
      %s126 = sadd.s32 %s125, 1
      %p129 = scmp.eq.s32.totalorder %s28, 1
      %p130 = scmp.ne.s32.totalorder %s125, %s127
      %p131 = scmp.eq.s32.totalorder %s28, 0
      %p132 = por %p130, %p131
      %p133 = scmp.ne.s32.totalorder %s125, %s127
      %p134 = scmp.eq.s32.totalorder %s33, 1
      %p135 = por %p133, %p134
      %p136 = scmp.ne.s32.totalorder %s127, %s128
      %p137 = scmp.eq.s32.totalorder %s33, 0
      %p138 = por %p136, %p137
      %p139 = scmp.ne.s32.totalorder %s127, %s128
      %p140 = scmp.eq.s32.totalorder %s34, 1
      %p141 = por %p139, %p140
      %p143 = scmp.ne.s32.totalorder %s128, %s142
      %p144 = scmp.eq.s32.totalorder %s34, 0
      %p145 = por %p143, %p144
      %s147 = sadd.s32 %s146, 1
      %p150 = scmp.eq.s32.totalorder %s28, 1
      %p151 = scmp.ne.s32.totalorder %s146, %s148
      %p152 = scmp.eq.s32.totalorder %s28, 0
      %p153 = por %p151, %p152
      %p154 = scmp.ne.s32.totalorder %s146, %s148
      %p155 = scmp.eq.s32.totalorder %s33, 1
      %p156 = por %p154, %p155
      %p157 = scmp.ne.s32.totalorder %s148, %s149
      %p158 = scmp.eq.s32.totalorder %s33, 0
      %p159 = por %p157, %p158
      %p160 = scmp.ne.s32.totalorder %s148, %s149
      %p161 = scmp.eq.s32.totalorder %s34, 1
      %p162 = por %p160, %p161
      %p164 = scmp.ne.s32.totalorder %s149, %s163
      %p165 = scmp.eq.s32.totalorder %s34, 0
      %p166 = por %p164, %p165
      %s168 = sadd.s32 %s167, 1
      %p171 = scmp.eq.s32.totalorder %s28, 1
      %p172 = scmp.ne.s32.totalorder %s167, %s169
      %p173 = scmp.eq.s32.totalorder %s28, 0
      %p174 = por %p172, %p173
      %p175 = scmp.ne.s32.totalorder %s167, %s169
      %p176 = scmp.eq.s32.totalorder %s33, 1
      %p177 = por %p175, %p176
      %p178 = scmp.ne.s32.totalorder %s169, %s170
      %p179 = scmp.eq.s32.totalorder %s33, 0
      %p180 = por %p178, %p179
      %p181 = scmp.ne.s32.totalorder %s169, %s170
      %p182 = scmp.eq.s32.totalorder %s34, 1
      %p183 = por %p181, %p182
      %p185 = scmp.ne.s32.totalorder %s170, %s184
      %p186 = scmp.eq.s32.totalorder %s34, 0
      %p187 = por %p185, %p186
      %s189 = sadd.s32 %s188, 1
      %p192 = scmp.eq.s32.totalorder %s28, 1
      %p193 = scmp.ne.s32.totalorder %s188, %s190
      %p194 = scmp.eq.s32.totalorder %s28, 0
      %p195 = por %p193, %p194
      %p196 = scmp.ne.s32.totalorder %s188, %s190
      %p197 = scmp.eq.s32.totalorder %s33, 1
      %p198 = por %p196, %p197
      %p199 = scmp.ne.s32.totalorder %s190, %s191
      %p200 = scmp.eq.s32.totalorder %s33, 0
      %p201 = por %p199, %p200
      %p202 = scmp.ne.s32.totalorder %s190, %s191
      %p203 = scmp.eq.s32.totalorder %s34, 1
      %p204 = por %p202, %p203
      %p206 = scmp.ne.s32.totalorder %s191, %s205
      %p207 = scmp.eq.s32.totalorder %s34, 0
      %p208 = por %p206, %p207
      %s210 = sadd.s32 %s209, 1
      %p213 = scmp.eq.s32.totalorder %s28, 1
      %p214 = scmp.ne.s32.totalorder %s209, %s211
      %p215 = scmp.eq.s32.totalorder %s28, 0
      %p216 = por %p214, %p215
      %p217 = scmp.ne.s32.totalorder %s209, %s211
      %p218 = scmp.eq.s32.totalorder %s33, 1
      %p219 = por %p217, %p218
      %p220 = scmp.ne.s32.totalorder %s211, %s212
      %p221 = scmp.eq.s32.totalorder %s33, 0
      %p222 = por %p220, %p221
      %p223 = scmp.ne.s32.totalorder %s211, %s212
      %p224 = scmp.eq.s32.totalorder %s34, 1
      %p225 = por %p223, %p224
      %p227 = scmp.ne.s32.totalorder %s212, %s226
      %p228 = scmp.eq.s32.totalorder %s34, 0
      %p229 = por %p227, %p228
      %s231 = sadd.s32 %s230, 1
      %p234 = scmp.eq.s32.totalorder %s28, 1
      %p235 = scmp.ne.s32.totalorder %s230, %s232
      %p236 = scmp.eq.s32.totalorder %s28, 0
      %p237 = por %p235, %p236
      %p238 = scmp.ne.s32.totalorder %s230, %s232
      %p239 = scmp.eq.s32.totalorder %s33, 1
      %p240 = por %p238, %p239
      %p241 = scmp.ne.s32.totalorder %s232, %s233
      %p242 = scmp.eq.s32.totalorder %s33, 0
      %p243 = por %p241, %p242
      %p244 = scmp.ne.s32.totalorder %s232, %s233
      %p245 = scmp.eq.s32.totalorder %s34, 1
      %p246 = por %p244, %p245
      %p248 = scmp.ne.s32.totalorder %s233, %s247
      %p249 = scmp.eq.s32.totalorder %s34, 0
      %p250 = por %p248, %p249
      %s251 = ssub.s32 %s28, %s35
      %p252 = scmp.eq.s32.totalorder %s251, 0
      %s254 = sadd.s32 %s253, 1
      %s255 = scalar_select %p252, %s253, %s254
      %p258 = pneg %p252
      %p259 = scmp.eq.s32.totalorder %s28, 1
      %p260 = por %p258, %p259
      %p261 = scmp.ne.s32.totalorder %s253, %s256
      %p262 = scmp.eq.s32.totalorder %s28, 0
      %p263 = por %p261, %p262
      %p264 = scmp.ne.s32.totalorder %s253, %s256
      %p265 = scmp.eq.s32.totalorder %s33, 1
      %p266 = por %p264, %p265
      %p267 = scmp.ne.s32.totalorder %s256, %s257
      %p268 = scmp.eq.s32.totalorder %s33, 0
      %p269 = por %p267, %p268
      %p270 = scmp.ne.s32.totalorder %s256, %s257
      %p271 = scmp.eq.s32.totalorder %s34, 1
      %p272 = por %p270, %p271
      %p274 = scmp.ne.s32.totalorder %s257, %s273
      %p275 = scmp.eq.s32.totalorder %s34, 0
      %p276 = por %p274, %p275
      %s277 = ssub.s32 %s28, %s35
      %p278 = scmp.eq.s32.totalorder %s277, 0
      %s280 = sadd.s32 %s279, 1
      %s281 = scalar_select %p278, %s279, %s280
      %p284 = pneg %p278
      %p285 = scmp.eq.s32.totalorder %s28, 1
      %p286 = por %p284, %p285
      %p287 = scmp.ne.s32.totalorder %s279, %s282
      %p288 = scmp.eq.s32.totalorder %s28, 0
      %p289 = por %p287, %p288
      %p290 = scmp.ne.s32.totalorder %s279, %s282
      %p291 = scmp.eq.s32.totalorder %s33, 1
      %p292 = por %p290, %p291
      %p293 = scmp.ne.s32.totalorder %s282, %s283
      %p294 = scmp.eq.s32.totalorder %s33, 0
      %p295 = por %p293, %p294
      %p296 = scmp.ne.s32.totalorder %s282, %s283
      %p297 = scmp.eq.s32.totalorder %s34, 1
      %p298 = por %p296, %p297
      %p300 = scmp.ne.s32.totalorder %s283, %s299
      %p301 = scmp.eq.s32.totalorder %s34, 0
      %p302 = por %p300, %p301
      %p303 = scmp.le.s32.totalorder 1, %s28
      %p304 = scmp.lt.s32.totalorder %s28, 3
      %p305 = pnand %p303, %p304
      %p306 = pneg %p305
      // Predicated region
      $region9: #{tpu_custom_call.1} parent=5 // pred_check
        _
      $region10: #{tpu_custom_call.1} parent=5 // pred_check_branch
        %308 = sbr.rel (%p305) target = $region12
      $region11: #{tpu_custom_call.1} parent=5 // pred_region
        %s309 = ssub.s32 %s28, 1
        // Predicated region
        $region13: #{tpu_custom_call.1} parent=11 // pred_check
          %p310 = pneg %p75
        $region14: #{tpu_custom_call.1} parent=11 // pred_check_branch
          %312 = sbr.rel (%p310) target = $region16
        $region15: #{tpu_custom_call.1} parent=11 // pred_region
          %314 = vsyncadd [#allocation6], 0
          %s315 = sshll.u32 %s1, 4
          %s316 = int_to_ptr.hbm [resolvable:$true] %s315
          %s317 = sshll.u32 [#allocation5], 4
          %s318 = int_to_ptr.vmem [resolvable:$true] %s317
          %323 = dma.hbm_to_vmem [thread:$0]  %s316, 8192, %s318, [#allocation6], 256, 256, 16
        $region16: #{tpu_custom_call.1} parent=11 // pred_fallthru
          _
        // Predicated region
        $region17: #{tpu_custom_call.1} parent=11 // pred_check
          %p324 = pneg %p96
        $region18: #{tpu_custom_call.1} parent=11 // pred_check_branch
          %326 = sbr.rel (%p324) target = $region20
        $region19: #{tpu_custom_call.1} parent=11 // pred_region
          _
        $region20: #{tpu_custom_call.1} parent=11 // pred_fallthru
          _
        // Predicated region
        $region21: #{tpu_custom_call.1} parent=11 // pred_check
          %p327 = pneg %p117
        $region22: #{tpu_custom_call.1} parent=11 // pred_check_branch
          %329 = sbr.rel (%p327) target = $region24
        $region23: #{tpu_custom_call.1} parent=11 // pred_region
          _
        $region24: #{tpu_custom_call.1} parent=11 // pred_fallthru
          _
        // Predicated region
        $region25: #{tpu_custom_call.1} parent=11 // pred_check
          %p330 = pneg %p138
        $region26: #{tpu_custom_call.1} parent=11 // pred_check_branch
          %332 = sbr.rel (%p330) target = $region28
        $region27: #{tpu_custom_call.1} parent=11 // pred_region
          _
        $region28: #{tpu_custom_call.1} parent=11 // pred_fallthru
          _
        // Predicated region
        $region29: #{tpu_custom_call.1} parent=11 // pred_check
          %p333 = pneg %p159
        $region30: #{tpu_custom_call.1} parent=11 // pred_check_branch
          %335 = sbr.rel (%p333) target = $region32
        $region31: #{tpu_custom_call.1} parent=11 // pred_region
          _
        $region32: #{tpu_custom_call.1} parent=11 // pred_fallthru
          _
        // Predicated region
        $region33: #{tpu_custom_call.1} parent=11 // pred_check
          %p336 = pneg %p180
        $region34: #{tpu_custom_call.1} parent=11 // pred_check_branch
          %338 = sbr.rel (%p336) target = $region36
        $region35: #{tpu_custom_call.1} parent=11 // pred_region
          _
        $region36: #{tpu_custom_call.1} parent=11 // pred_fallthru
          _
        // Predicated region
        $region37: #{tpu_custom_call.1} parent=11 // pred_check
          %p339 = pneg %p201
        $region38: #{tpu_custom_call.1} parent=11 // pred_check_branch
          %341 = sbr.rel (%p339) target = $region40
        $region39: #{tpu_custom_call.1} parent=11 // pred_region
          _
        $region40: #{tpu_custom_call.1} parent=11 // pred_fallthru
          _
        // Predicated region
        $region41: #{tpu_custom_call.1} parent=11 // pred_check
          %p342 = pneg %p222
        $region42: #{tpu_custom_call.1} parent=11 // pred_check_branch
          %344 = sbr.rel (%p342) target = $region44
        $region43: #{tpu_custom_call.1} parent=11 // pred_region
          _
        $region44: #{tpu_custom_call.1} parent=11 // pred_fallthru
          _
        // Predicated region
        $region45: #{tpu_custom_call.1} parent=11 // pred_check
          %p345 = pneg %p243
        $region46: #{tpu_custom_call.1} parent=11 // pred_check_branch
          %347 = sbr.rel (%p345) target = $region48
        $region47: #{tpu_custom_call.1} parent=11 // pred_region
          _
        $region48: #{tpu_custom_call.1} parent=11 // pred_fallthru
          _
      $region12: #{tpu_custom_call.1} parent=5 // pred_fallthru
        _
      %p348 = scmp.lt.s32.totalorder %s28, 2
      // Predicated region
      $region49: #{tpu_custom_call.1} parent=5 // pred_check
        %p349 = pneg %p348
      $region50: #{tpu_custom_call.1} parent=5 // pred_check_branch
        %351 = sbr.rel (%p349) target = $region52
      $region51: #{tpu_custom_call.1} parent=5 // pred_region
        // Predicated region
        $region53: #{tpu_custom_call.1} parent=51 // pred_check
          %p352 = pneg %p48
        $region54: #{tpu_custom_call.1} parent=51 // pred_check_branch
          %354 = sbr.rel (%p352) target = $region56
        $region55: #{tpu_custom_call.1} parent=51 // pred_region
          %s355 = sand.u32 %s38, 1
          %s356 = scalar_lea.sflag [#allocation3], %s355
          %s357 = sand.u32 %s38, 1
          %s358 = smul.addr %s357, 16
          %s359 = scalar_lea.vmem [#allocation2], %s358
          %361 = vsyncadd %s356, 0
          %s362 = smul.addr %s28, 2
          %s363 = smul.addr %s362, 8
          %s364 = scalar_lea.hbm %s0, %s363
          %s366 = sshll.u32 %s364, 4
          %s367 = int_to_ptr.hbm [resolvable:$true] %s366
          %s368 = sshll.u32 %s359, 4
          %s369 = int_to_ptr.vmem [resolvable:$true] %s368
          %371 = dma.hbm_to_vmem [thread:$0]  %s367, 256, %s369, %s356
        $region56: #{tpu_custom_call.1} parent=51 // pred_fallthru
          _
      $region52: #{tpu_custom_call.1} parent=5 // pred_fallthru
        _
      %p372 = scmp.le.s32.totalorder 1, %s28
      %p373 = scmp.lt.s32.totalorder %s28, 3
      %p374 = pnand %p372, %p373
      %p375 = pneg %p374
      // Predicated region
      $region57: #{tpu_custom_call.1} parent=5 // pred_check
        _
      $region58: #{tpu_custom_call.1} parent=5 // pred_check_branch
        %377 = sbr.rel (%p374) target = $region60
      $region59: #{tpu_custom_call.1} parent=5 // pred_region
        %s378 = ssub.s32 %s28, 1
        %s379 = sand.u32 %s41, 1
        %s380 = scalar_lea.sflag [#allocation3], %s379
        %s381 = sand.u32 %s41, 1
        %s382 = smul.addr %s381, 16
        %s383 = scalar_lea.vmem [#allocation2], %s382
        // Predicated region
        $region61: #{tpu_custom_call.1} parent=59 // pred_check
          %p384 = pneg %p54
        $region62: #{tpu_custom_call.1} parent=59 // pred_check_branch
          %386 = sbr.rel (%p384) target = $region64
        $region63: #{tpu_custom_call.1} parent=59 // pred_region
          %388 = dma.done %s380, 256
        $region64: #{tpu_custom_call.1} parent=59 // pred_fallthru
          _
        // Predicated region
        $region65: #{tpu_custom_call.1} parent=59 // pred_check
          %p389 = pneg %p75
        $region66: #{tpu_custom_call.1} parent=59 // pred_check_branch
          %391 = sbr.rel (%p389) target = $region68
        $region67: #{tpu_custom_call.1} parent=59 // pred_region
          %393 = dma.done [#allocation6], 8192
        $region68: #{tpu_custom_call.1} parent=59 // pred_fallthru
          _
        %s394 = sand.u32 %s41, 1
        %s395 = scalar_lea.sflag [#allocation3], %s394
        %s396 = sand.u32 %s41, 1
        %s397 = smul.addr %s396, 16
        %s398 = scalar_lea.vmem [#allocation2], %s397
        %p399 = pneg %p54
        %p400 = pneg %p51
        %p401 = pneg %p75
        %p402 = pneg %p72
        %p403 = pneg %p96
        %p404 = pneg %p93
        %p405 = pneg %p117
        %p406 = pneg %p114
        %p407 = pneg %p138
        %p408 = pneg %p135
        %p409 = pneg %p159
        %p410 = pneg %p156
        %p411 = pneg %p180
        %p412 = pneg %p177
        %p413 = pneg %p201
        %p414 = pneg %p198
        %p415 = pneg %p222
        %p416 = pneg %p219
        %p417 = pneg %p243
        %p418 = pneg %p240
        %p419 = pneg %p269
        %p420 = pneg %p266
        %s421 = sand.u32 %s256, 1
        %s422 = scalar_lea.sflag [#allocation4], %s421
        %s423 = sand.u32 %s256, 1
        %s424 = smul.addr %s423, 16
        %s425 = scalar_lea.vmem [#allocation7], %s424
        %p426 = pneg %p295
        %p427 = pneg %p292
        %s428 = sand.u32 %s282, 1
        %s429 = scalar_lea.sflag [#allocation9], %s428
        %s430 = sand.u32 %s282, 1
        %s431 = smul.addr %s430, 16
        %s432 = scalar_lea.vmem [#allocation8], %s431
        %v433 = vld [vmem:[%s383] sm:$0xff]
        %v434 = vld [vmem:[%s383 + $0x8] sm:$0xff]
        %v435 = vld [vmem:[%s2] sm:$0xff]
        %v436 = vld [vmem:[%s3] sm:$0xff]
        %438 = vset.pattern.permute.xlu0 0
        %439 = vperm.xlu0 %438, %v436
        %v440 = vpop.permute.xlu0 %439
        %vm442 = vcmask 64512
        %v444 = vsel %vm442, %v435, 0
        %446 = vmatpush.msra.mxu0 0.0
        %447 = vmatpush.msra.mxu0 0.0
        %448 = vmatpush.msra.mxu0 0.0
        %449 = vmatpush.msra.mxu0 0.0
        %450 = vmatpush.msra.mxu0 0.0
        %451 = vmatpush.msra.mxu0 0.0
        %452 = vmatpush.msra.mxu0 0.0
        %453 = vmatpush.msra.mxu0 0.0
        %454 = vmatpush.msra.mxu0 0.0
        %455 = vmatpush.msra.mxu0 0.0
        %456 = vmatpush.msra.mxu0 0.0
        %457 = vmatpush.msra.mxu0 0.0
        %458 = vmatpush.msra.mxu0 0.0
        %459 = vmatpush.msra.mxu0 0.0
        %460 = vmatpush.msra.mxu0 0.0
        %461 = vmatpush.msra.mxu0 %v433
        %462 = vmatmul.f32.gmra.mxu0 %v444
        %v463 = vpop.f32.mrf.mxu0
        %v464 = vadd.f32 %v440, %v463
        %465 = vdwg.mxu0
        %466 = vmatpush.msra.mxu0 0.0
        %467 = vmatpush.msra.mxu0 0.0
        %468 = vmatpush.msra.mxu0 0.0
        %469 = vmatpush.msra.mxu0 0.0
        %470 = vmatpush.msra.mxu0 0.0
        %471 = vmatpush.msra.mxu0 0.0
        %472 = vmatpush.msra.mxu0 0.0
        %473 = vmatpush.msra.mxu0 0.0
        %474 = vmatpush.msra.mxu0 0.0
        %475 = vmatpush.msra.mxu0 0.0
        %476 = vmatpush.msra.mxu0 0.0
        %477 = vmatpush.msra.mxu0 0.0
        %478 = vmatpush.msra.mxu0 0.0
        %479 = vmatpush.msra.mxu0 0.0
        %480 = vmatpush.msra.mxu0 0.0
        %481 = vmatpush.msra.mxu0 %v434
        %482 = vmatmul.f32.gmra.mxu0 %v444
        %v483 = vpop.f32.mrf.mxu0
        %v484 = vadd.f32 %v440, %v483
        %485 = vdwg.mxu0
        %v486 = vld [vmem:[%s4] sm:$0xff]
        %v487 = vld [vmem:[%s5] sm:$0xff]
        %489 = vset.pattern.permute.xlu0 0
        %490 = vperm.xlu0 %489, %v487
        %v491 = vpop.permute.xlu0 %490
        %v494 = vsel %vm442, %v486, 0
        %496 = vmatpush.msra.mxu0 0.0
        %497 = vmatpush.msra.mxu0 0.0
        %498 = vmatpush.msra.mxu0 0.0
        %499 = vmatpush.msra.mxu0 0.0
        %500 = vmatpush.msra.mxu0 0.0
        %501 = vmatpush.msra.mxu0 0.0
        %502 = vmatpush.msra.mxu0 0.0
        %503 = vmatpush.msra.mxu0 0.0
        %504 = vmatpush.msra.mxu0 0.0
        %505 = vmatpush.msra.mxu0 0.0
        %506 = vmatpush.msra.mxu0 0.0
        %507 = vmatpush.msra.mxu0 0.0
        %508 = vmatpush.msra.mxu0 0.0
        %509 = vmatpush.msra.mxu0 0.0
        %510 = vmatpush.msra.mxu0 0.0
        %511 = vmatpush.msra.mxu0 %v433
        %512 = vmatmul.f32.gmra.mxu0 %v494
        %v513 = vpop.f32.mrf.mxu0
        %v514 = vadd.f32 %v491, %v513
        %515 = vdwg.mxu0
        %516 = vmatpush.msra.mxu0 0.0
        %517 = vmatpush.msra.mxu0 0.0
        %518 = vmatpush.msra.mxu0 0.0
        %519 = vmatpush.msra.mxu0 0.0
        %520 = vmatpush.msra.mxu0 0.0
        %521 = vmatpush.msra.mxu0 0.0
        %522 = vmatpush.msra.mxu0 0.0
        %523 = vmatpush.msra.mxu0 0.0
        %524 = vmatpush.msra.mxu0 0.0
        %525 = vmatpush.msra.mxu0 0.0
        %526 = vmatpush.msra.mxu0 0.0
        %527 = vmatpush.msra.mxu0 0.0
        %528 = vmatpush.msra.mxu0 0.0
        %529 = vmatpush.msra.mxu0 0.0
        %530 = vmatpush.msra.mxu0 0.0
        %531 = vmatpush.msra.mxu0 %v434
        %532 = vmatmul.f32.gmra.mxu0 %v494
        %v533 = vpop.f32.mrf.mxu0
        %v534 = vadd.f32 %v491, %v533
        %535 = vdwg.mxu0
        %v536 = vld [vmem:[%s6] sm:$0xff]
        %v537 = vld [vmem:[%s7] sm:$0xff]
        %539 = vset.pattern.permute.xlu0 0
        %540 = vperm.xlu0 %539, %v537
        %v541 = vpop.permute.xlu0 %540
        %v544 = vsel %vm442, %v536, 0
        %546 = vmatpush.msra.mxu0 0.0
        %547 = vmatpush.msra.mxu0 0.0
        %548 = vmatpush.msra.mxu0 0.0
        %549 = vmatpush.msra.mxu0 0.0
        %550 = vmatpush.msra.mxu0 0.0
        %551 = vmatpush.msra.mxu0 0.0
        %552 = vmatpush.msra.mxu0 0.0
        %553 = vmatpush.msra.mxu0 0.0
        %554 = vmatpush.msra.mxu0 0.0
        %555 = vmatpush.msra.mxu0 0.0
        %556 = vmatpush.msra.mxu0 0.0
        %557 = vmatpush.msra.mxu0 0.0
        %558 = vmatpush.msra.mxu0 0.0
        %559 = vmatpush.msra.mxu0 0.0
        %560 = vmatpush.msra.mxu0 0.0
        %561 = vmatpush.msra.mxu0 %v433
        %562 = vmatmul.f32.gmra.mxu0 %v544
        %v563 = vpop.f32.mrf.mxu0
        %v564 = vadd.f32 %v541, %v563
        %565 = vdwg.mxu0
        %566 = vmatpush.msra.mxu0 0.0
        %567 = vmatpush.msra.mxu0 0.0
        %568 = vmatpush.msra.mxu0 0.0
        %569 = vmatpush.msra.mxu0 0.0
        %570 = vmatpush.msra.mxu0 0.0
        %571 = vmatpush.msra.mxu0 0.0
        %572 = vmatpush.msra.mxu0 0.0
        %573 = vmatpush.msra.mxu0 0.0
        %574 = vmatpush.msra.mxu0 0.0
        %575 = vmatpush.msra.mxu0 0.0
        %576 = vmatpush.msra.mxu0 0.0
        %577 = vmatpush.msra.mxu0 0.0
        %578 = vmatpush.msra.mxu0 0.0
        %579 = vmatpush.msra.mxu0 0.0
        %580 = vmatpush.msra.mxu0 0.0
        %581 = vmatpush.msra.mxu0 %v434
        %582 = vmatmul.f32.gmra.mxu0 %v544
        %v583 = vpop.f32.mrf.mxu0
        %v584 = vadd.f32 %v541, %v583
        %585 = vdwg.mxu0
        %586 = vxpose.xlu0.b32.start [1/16] %v464, 128
        %587 = vxpose.xlu0.b32.cont [2/16] 0.0, 128
        %588 = vxpose.xlu0.b32.cont [3/16] 0.0, 128
        %589 = vxpose.xlu0.b32.cont [4/16] 0.0, 128
        %590 = vxpose.xlu0.b32.cont [5/16] 0.0, 128
        %591 = vxpose.xlu0.b32.cont [6/16] 0.0, 128
        %592 = vxpose.xlu0.b32.cont [7/16] 0.0, 128
        %593 = vxpose.xlu0.b32.cont [8/16] 0.0, 128
        %594 = vxpose.xlu0.b32.cont [9/16] 0.0, 128
        %595 = vxpose.xlu0.b32.cont [10/16] 0.0, 128
        %596 = vxpose.xlu0.b32.cont [11/16] 0.0, 128
        %597 = vxpose.xlu0.b32.cont [12/16] 0.0, 128
        %598 = vxpose.xlu0.b32.cont [13/16] 0.0, 128
        %599 = vxpose.xlu0.b32.cont [14/16] 0.0, 128
        %600 = vxpose.xlu0.b32.cont [15/16] 0.0, 128
        %601 = vxpose.xlu0.b32.end [16/16] 0.0, 128
        %v602 = vpop.trf.xlu0
        %v603 = vpop.trf.xlu0
        %v604 = vpop.trf.xlu0
        %v605 = vpop.trf.xlu0
        %v606 = vpop.trf.xlu0
        %v607 = vpop.trf.xlu0
        %v608 = vpop.trf.xlu0
        %v609 = vpop.trf.xlu0
        %v610 = vpop.trf.xlu0
        %v611 = vpop.trf.xlu0
        %v612 = vpop.trf.xlu0
        %v613 = vpop.trf.xlu0
        %v614 = vpop.trf.xlu0
        %v615 = vpop.trf.xlu0
        %v616 = vpop.trf.xlu0
        %v617 = vpop.trf.xlu0
        %618 = vxpose.xlu0.b32.start [1/16] %v484, 128
        %619 = vxpose.xlu0.b32.cont [2/16] 0.0, 128
        %620 = vxpose.xlu0.b32.cont [3/16] 0.0, 128
        %621 = vxpose.xlu0.b32.cont [4/16] 0.0, 128
        %622 = vxpose.xlu0.b32.cont [5/16] 0.0, 128
        %623 = vxpose.xlu0.b32.cont [6/16] 0.0, 128
        %624 = vxpose.xlu0.b32.cont [7/16] 0.0, 128
        %625 = vxpose.xlu0.b32.cont [8/16] 0.0, 128
        %626 = vxpose.xlu0.b32.cont [9/16] 0.0, 128
        %627 = vxpose.xlu0.b32.cont [10/16] 0.0, 128
        %628 = vxpose.xlu0.b32.cont [11/16] 0.0, 128
        %629 = vxpose.xlu0.b32.cont [12/16] 0.0, 128
        %630 = vxpose.xlu0.b32.cont [13/16] 0.0, 128
        %631 = vxpose.xlu0.b32.cont [14/16] 0.0, 128
        %632 = vxpose.xlu0.b32.cont [15/16] 0.0, 128
        %633 = vxpose.xlu0.b32.end [16/16] 0.0, 128
        %v634 = vpop.trf.xlu0
        %v635 = vpop.trf.xlu0
        %v636 = vpop.trf.xlu0
        %v637 = vpop.trf.xlu0
        %v638 = vpop.trf.xlu0
        %v639 = vpop.trf.xlu0
        %v640 = vpop.trf.xlu0
        %v641 = vpop.trf.xlu0
        %v642 = vpop.trf.xlu0
        %v643 = vpop.trf.xlu0
        %v644 = vpop.trf.xlu0
        %v645 = vpop.trf.xlu0
        %v646 = vpop.trf.xlu0
        %v647 = vpop.trf.xlu0
        %v648 = vpop.trf.xlu0
        %v649 = vpop.trf.xlu0
        %v651 = vsel %vm442, %v602, 0
        %v654 = vsel %vm442, %v603, 0
        %v657 = vsel %vm442, %v604, 0
        %v660 = vsel %vm442, %v605, 0
        %v663 = vsel %vm442, %v606, 0
        %v666 = vsel %vm442, %v607, 0
        %v669 = vsel %vm442, %v608, 0
        %v672 = vsel %vm442, %v609, 0
        %v675 = vsel %vm442, %v610, 0
        %v678 = vsel %vm442, %v611, 0
        %v681 = vsel %vm442, %v612, 0
        %v684 = vsel %vm442, %v613, 0
        %v687 = vsel %vm442, %v614, 0
        %v690 = vsel %vm442, %v615, 0
        %v693 = vsel %vm442, %v616, 0
        %v696 = vsel %vm442, %v617, 0
        %v699 = vsel %vm442, %v634, 0
        %v702 = vsel %vm442, %v635, 0
        %v705 = vsel %vm442, %v636, 0
        %v708 = vsel %vm442, %v637, 0
        %v711 = vsel %vm442, %v638, 0
        %v714 = vsel %vm442, %v639, 0
        %v717 = vsel %vm442, %v640, 0
        %v720 = vsel %vm442, %v641, 0
        %v723 = vsel %vm442, %v642, 0
        %v726 = vsel %vm442, %v643, 0
        %v729 = vsel %vm442, %v644, 0
        %v732 = vsel %vm442, %v645, 0
        %v735 = vsel %vm442, %v646, 0
        %v738 = vsel %vm442, %v647, 0
        %v741 = vsel %vm442, %v648, 0
        %v744 = vsel %vm442, %v649, 0
        %746 = vmatpush.msra.mxu0 0.0
        %747 = vmatpush.msra.mxu0 0.0
        %748 = vmatpush.msra.mxu0 0.0
        %749 = vmatpush.msra.mxu0 0.0
        %750 = vmatpush.msra.mxu0 0.0
        %751 = vmatpush.msra.mxu0 0.0
        %752 = vmatpush.msra.mxu0 0.0
        %753 = vmatpush.msra.mxu0 0.0
        %754 = vmatpush.msra.mxu0 0.0
        %755 = vmatpush.msra.mxu0 0.0
        %756 = vmatpush.msra.mxu0 0.0
        %757 = vmatpush.msra.mxu0 0.0
        %758 = vmatpush.msra.mxu0 0.0
        %759 = vmatpush.msra.mxu0 0.0
        %760 = vmatpush.msra.mxu0 0.0
        %761 = vmatpush.msra.mxu0 %v514
        %762 = vmatmul.f32.gmra.mxu0 %v651
        %v763 = vpop.f32.mrf.mxu0
        %v764 = vadd.f32 0.0, %v763
        %765 = vmatmul.f32.gmra.mxu0 %v654
        %v766 = vpop.f32.mrf.mxu0
        %v767 = vadd.f32 0.0, %v766
        %768 = vmatmul.f32.gmra.mxu0 %v657
        %v769 = vpop.f32.mrf.mxu0
        %v770 = vadd.f32 0.0, %v769
        %771 = vmatmul.f32.gmra.mxu0 %v660
        %v772 = vpop.f32.mrf.mxu0
        %v773 = vadd.f32 0.0, %v772
        %774 = vmatmul.f32.gmra.mxu0 %v663
        %v775 = vpop.f32.mrf.mxu0
        %v776 = vadd.f32 0.0, %v775
        %777 = vmatmul.f32.gmra.mxu0 %v666
        %v778 = vpop.f32.mrf.mxu0
        %v779 = vadd.f32 0.0, %v778
        %780 = vmatmul.f32.gmra.mxu0 %v669
        %v781 = vpop.f32.mrf.mxu0
        %v782 = vadd.f32 0.0, %v781
        %783 = vmatmul.f32.gmra.mxu0 %v672
        %v784 = vpop.f32.mrf.mxu0
        %v785 = vadd.f32 0.0, %v784
        %786 = vmatmul.f32.gmra.mxu0 %v675
        %v787 = vpop.f32.mrf.mxu0
        %v788 = vadd.f32 0.0, %v787
        %789 = vmatmul.f32.gmra.mxu0 %v678
        %v790 = vpop.f32.mrf.mxu0
        %v791 = vadd.f32 0.0, %v790
        %792 = vmatmul.f32.gmra.mxu0 %v681
        %v793 = vpop.f32.mrf.mxu0
        %v794 = vadd.f32 0.0, %v793
        %795 = vmatmul.f32.gmra.mxu0 %v684
        %v796 = vpop.f32.mrf.mxu0
        %v797 = vadd.f32 0.0, %v796
        %798 = vmatmul.f32.gmra.mxu0 %v687
        %v799 = vpop.f32.mrf.mxu0
        %v800 = vadd.f32 0.0, %v799
        %801 = vmatmul.f32.gmra.mxu0 %v690
        %v802 = vpop.f32.mrf.mxu0
        %v803 = vadd.f32 0.0, %v802
        %804 = vmatmul.f32.gmra.mxu0 %v693
        %v805 = vpop.f32.mrf.mxu0
        %v806 = vadd.f32 0.0, %v805
        %807 = vmatmul.f32.gmra.mxu0 %v696
        %v808 = vpop.f32.mrf.mxu0
        %v809 = vadd.f32 0.0, %v808
        %810 = vmatmul.f32.gmra.mxu0 %v699
        %v811 = vpop.f32.mrf.mxu0
        %v812 = vadd.f32 0.0, %v811
        %813 = vmatmul.f32.gmra.mxu0 %v702
        %v814 = vpop.f32.mrf.mxu0
        %v815 = vadd.f32 0.0, %v814
        %816 = vmatmul.f32.gmra.mxu0 %v705
        %v817 = vpop.f32.mrf.mxu0
        %v818 = vadd.f32 0.0, %v817
        %819 = vmatmul.f32.gmra.mxu0 %v708
        %v820 = vpop.f32.mrf.mxu0
        %v821 = vadd.f32 0.0, %v820
        %822 = vmatmul.f32.gmra.mxu0 %v711
        %v823 = vpop.f32.mrf.mxu0
        %v824 = vadd.f32 0.0, %v823
        %825 = vmatmul.f32.gmra.mxu0 %v714
        %v826 = vpop.f32.mrf.mxu0
        %v827 = vadd.f32 0.0, %v826
        %828 = vmatmul.f32.gmra.mxu0 %v717
        %v829 = vpop.f32.mrf.mxu0
        %v830 = vadd.f32 0.0, %v829
        %831 = vmatmul.f32.gmra.mxu0 %v720
        %v832 = vpop.f32.mrf.mxu0
        %v833 = vadd.f32 0.0, %v832
        %834 = vmatmul.f32.gmra.mxu0 %v723
        %v835 = vpop.f32.mrf.mxu0
        %v836 = vadd.f32 0.0, %v835
        %837 = vmatmul.f32.gmra.mxu0 %v726
        %v838 = vpop.f32.mrf.mxu0
        %v839 = vadd.f32 0.0, %v838
        %840 = vmatmul.f32.gmra.mxu0 %v729
        %v841 = vpop.f32.mrf.mxu0
        %v842 = vadd.f32 0.0, %v841
        %843 = vmatmul.f32.gmra.mxu0 %v732
        %v844 = vpop.f32.mrf.mxu0
        %v845 = vadd.f32 0.0, %v844
        %846 = vmatmul.f32.gmra.mxu0 %v735
        %v847 = vpop.f32.mrf.mxu0
        %v848 = vadd.f32 0.0, %v847
        %849 = vmatmul.f32.gmra.mxu0 %v738
        %v850 = vpop.f32.mrf.mxu0
        %v851 = vadd.f32 0.0, %v850
        %852 = vmatmul.f32.gmra.mxu0 %v741
        %v853 = vpop.f32.mrf.mxu0
        %v854 = vadd.f32 0.0, %v853
        %855 = vmatmul.f32.gmra.mxu0 %v744
        %v856 = vpop.f32.mrf.mxu0
        %v857 = vadd.f32 0.0, %v856
        %858 = vdwg.mxu0
        %859 = vmatpush.msra.mxu0 0.0
        %860 = vmatpush.msra.mxu0 0.0
        %861 = vmatpush.msra.mxu0 0.0
        %862 = vmatpush.msra.mxu0 0.0
        %863 = vmatpush.msra.mxu0 0.0
        %864 = vmatpush.msra.mxu0 0.0
        %865 = vmatpush.msra.mxu0 0.0
        %866 = vmatpush.msra.mxu0 0.0
        %867 = vmatpush.msra.mxu0 0.0
        %868 = vmatpush.msra.mxu0 0.0
        %869 = vmatpush.msra.mxu0 0.0
        %870 = vmatpush.msra.mxu0 0.0
        %871 = vmatpush.msra.mxu0 0.0
        %872 = vmatpush.msra.mxu0 0.0
        %873 = vmatpush.msra.mxu0 0.0
        %874 = vmatpush.msra.mxu0 %v534
        %875 = vmatmul.f32.gmra.mxu0 %v651
        %v876 = vpop.f32.mrf.mxu0
        %v877 = vadd.f32 0.0, %v876
        %878 = vmatmul.f32.gmra.mxu0 %v654
        %v879 = vpop.f32.mrf.mxu0
        %v880 = vadd.f32 0.0, %v879
        %881 = vmatmul.f32.gmra.mxu0 %v657
        %v882 = vpop.f32.mrf.mxu0
        %v883 = vadd.f32 0.0, %v882
        %884 = vmatmul.f32.gmra.mxu0 %v660
        %v885 = vpop.f32.mrf.mxu0
        %v886 = vadd.f32 0.0, %v885
        %887 = vmatmul.f32.gmra.mxu0 %v663
        %v888 = vpop.f32.mrf.mxu0
        %v889 = vadd.f32 0.0, %v888
        %890 = vmatmul.f32.gmra.mxu0 %v666
        %v891 = vpop.f32.mrf.mxu0
        %v892 = vadd.f32 0.0, %v891
        %893 = vmatmul.f32.gmra.mxu0 %v669
        %v894 = vpop.f32.mrf.mxu0
        %v895 = vadd.f32 0.0, %v894
        %896 = vmatmul.f32.gmra.mxu0 %v672
        %v897 = vpop.f32.mrf.mxu0
        %v898 = vadd.f32 0.0, %v897
        %899 = vmatmul.f32.gmra.mxu0 %v675
        %v900 = vpop.f32.mrf.mxu0
        %v901 = vadd.f32 0.0, %v900
        %902 = vmatmul.f32.gmra.mxu0 %v678
        %v903 = vpop.f32.mrf.mxu0
        %v904 = vadd.f32 0.0, %v903
        %905 = vmatmul.f32.gmra.mxu0 %v681
        %v906 = vpop.f32.mrf.mxu0
        %v907 = vadd.f32 0.0, %v906
        %908 = vmatmul.f32.gmra.mxu0 %v684
        %v909 = vpop.f32.mrf.mxu0
        %v910 = vadd.f32 0.0, %v909
        %911 = vmatmul.f32.gmra.mxu0 %v687
        %v912 = vpop.f32.mrf.mxu0
        %v913 = vadd.f32 0.0, %v912
        %914 = vmatmul.f32.gmra.mxu0 %v690
        %v915 = vpop.f32.mrf.mxu0
        %v916 = vadd.f32 0.0, %v915
        %917 = vmatmul.f32.gmra.mxu0 %v693
        %v918 = vpop.f32.mrf.mxu0
        %v919 = vadd.f32 0.0, %v918
        %920 = vmatmul.f32.gmra.mxu0 %v696
        %v921 = vpop.f32.mrf.mxu0
        %v922 = vadd.f32 0.0, %v921
        %923 = vmatmul.f32.gmra.mxu0 %v699
        %v924 = vpop.f32.mrf.mxu0
        %v925 = vadd.f32 0.0, %v924
        %926 = vmatmul.f32.gmra.mxu0 %v702
        %v927 = vpop.f32.mrf.mxu0
        %v928 = vadd.f32 0.0, %v927
        %929 = vmatmul.f32.gmra.mxu0 %v705
        %v930 = vpop.f32.mrf.mxu0
        %v931 = vadd.f32 0.0, %v930
        %932 = vmatmul.f32.gmra.mxu0 %v708
        %v933 = vpop.f32.mrf.mxu0
        %v934 = vadd.f32 0.0, %v933
        %935 = vmatmul.f32.gmra.mxu0 %v711
        %v936 = vpop.f32.mrf.mxu0
        %v937 = vadd.f32 0.0, %v936
        %938 = vmatmul.f32.gmra.mxu0 %v714
        %v939 = vpop.f32.mrf.mxu0
        %v940 = vadd.f32 0.0, %v939
        %941 = vmatmul.f32.gmra.mxu0 %v717
        %v942 = vpop.f32.mrf.mxu0
        %v943 = vadd.f32 0.0, %v942
        %944 = vmatmul.f32.gmra.mxu0 %v720
        %v945 = vpop.f32.mrf.mxu0
        %v946 = vadd.f32 0.0, %v945
        %947 = vmatmul.f32.gmra.mxu0 %v723
        %v948 = vpop.f32.mrf.mxu0
        %v949 = vadd.f32 0.0, %v948
        %950 = vmatmul.f32.gmra.mxu0 %v726
        %v951 = vpop.f32.mrf.mxu0
        %v952 = vadd.f32 0.0, %v951
        %953 = vmatmul.f32.gmra.mxu0 %v729
        %v954 = vpop.f32.mrf.mxu0
        %v955 = vadd.f32 0.0, %v954
        %956 = vmatmul.f32.gmra.mxu0 %v732
        %v957 = vpop.f32.mrf.mxu0
        %v958 = vadd.f32 0.0, %v957
        %959 = vmatmul.f32.gmra.mxu0 %v735
        %v960 = vpop.f32.mrf.mxu0
        %v961 = vadd.f32 0.0, %v960
        %962 = vmatmul.f32.gmra.mxu0 %v738
        %v963 = vpop.f32.mrf.mxu0
        %v964 = vadd.f32 0.0, %v963
        %965 = vmatmul.f32.gmra.mxu0 %v741
        %v966 = vpop.f32.mrf.mxu0
        %v967 = vadd.f32 0.0, %v966
        %968 = vmatmul.f32.gmra.mxu0 %v744
        %v969 = vpop.f32.mrf.mxu0
        %v970 = vadd.f32 0.0, %v969
        %971 = vdwg.mxu0
        %v972 = vld [vmem:[#allocation5] sm:$0xff]
        %v973 = vld [vmem:[#allocation5 + $0x8] sm:$0xff]
        %v974 = vld [vmem:[#allocation5 + $0x10] sm:$0xff]
        %v975 = vld [vmem:[#allocation5 + $0x18] sm:$0xff]
        %v976 = vld [vmem:[#allocation5 + $0x20] sm:$0xff]
        %v977 = vld [vmem:[#allocation5 + $0x28] sm:$0xff]
        %v978 = vld [vmem:[#allocation5 + $0x30] sm:$0xff]
        %v979 = vld [vmem:[#allocation5 + $0x38] sm:$0xff]
        %v980 = vld [vmem:[#allocation5 + $0x40] sm:$0xff]
        %v981 = vld [vmem:[#allocation5 + $0x48] sm:$0xff]
        %v982 = vld [vmem:[#allocation5 + $0x50] sm:$0xff]
        %v983 = vld [vmem:[#allocation5 + $0x58] sm:$0xff]
        %v984 = vld [vmem:[#allocation5 + $0x60] sm:$0xff]
        %v985 = vld [vmem:[#allocation5 + $0x68] sm:$0xff]
        %v986 = vld [vmem:[#allocation5 + $0x70] sm:$0xff]
        %v987 = vld [vmem:[#allocation5 + $0x78] sm:$0xff]
        %v988 = vld [vmem:[#allocation5 + $0x80] sm:$0xff]
        %v989 = vld [vmem:[#allocation5 + $0x88] sm:$0xff]
        %v990 = vld [vmem:[#allocation5 + $0x90] sm:$0xff]
        %v991 = vld [vmem:[#allocation5 + $0x98] sm:$0xff]
        %v992 = vld [vmem:[#allocation5 + $0xa0] sm:$0xff]
        %v993 = vld [vmem:[#allocation5 + $0xa8] sm:$0xff]
        %v994 = vld [vmem:[#allocation5 + $0xb0] sm:$0xff]
        %v995 = vld [vmem:[#allocation5 + $0xb8] sm:$0xff]
        %v996 = vld [vmem:[#allocation5 + $0xc0] sm:$0xff]
        %v997 = vld [vmem:[#allocation5 + $0xc8] sm:$0xff]
        %v998 = vld [vmem:[#allocation5 + $0xd0] sm:$0xff]
        %v999 = vld [vmem:[#allocation5 + $0xd8] sm:$0xff]
        %v1000 = vld [vmem:[#allocation5 + $0xe0] sm:$0xff]
        %v1001 = vld [vmem:[#allocation5 + $0xe8] sm:$0xff]
        %v1002 = vld [vmem:[#allocation5 + $0xf0] sm:$0xff]
        %v1003 = vld [vmem:[#allocation5 + $0xf8] sm:$0xff]
        %v1004 = vld [vmem:[#allocation5 + $0x100] sm:$0xff]
        %v1005 = vld [vmem:[#allocation5 + $0x108] sm:$0xff]
        %v1006 = vld [vmem:[#allocation5 + $0x110] sm:$0xff]
        %v1007 = vld [vmem:[#allocation5 + $0x118] sm:$0xff]
        %v1008 = vld [vmem:[#allocation5 + $0x120] sm:$0xff]
        %v1009 = vld [vmem:[#allocation5 + $0x128] sm:$0xff]
        %v1010 = vld [vmem:[#allocation5 + $0x130] sm:$0xff]
        %v1011 = vld [vmem:[#allocation5 + $0x138] sm:$0xff]
        %v1012 = vld [vmem:[#allocation5 + $0x140] sm:$0xff]
        %v1013 = vld [vmem:[#allocation5 + $0x148] sm:$0xff]
        %v1014 = vld [vmem:[#allocation5 + $0x150] sm:$0xff]
        %v1015 = vld [vmem:[#allocation5 + $0x158] sm:$0xff]
        %v1016 = vld [vmem:[#allocation5 + $0x160] sm:$0xff]
        %v1017 = vld [vmem:[#allocation5 + $0x168] sm:$0xff]
        %v1018 = vld [vmem:[#allocation5 + $0x170] sm:$0xff]
        %v1019 = vld [vmem:[#allocation5 + $0x178] sm:$0xff]
        %v1020 = vld [vmem:[#allocation5 + $0x180] sm:$0xff]
        %v1021 = vld [vmem:[#allocation5 + $0x188] sm:$0xff]
        %v1022 = vld [vmem:[#allocation5 + $0x190] sm:$0xff]
        %v1023 = vld [vmem:[#allocation5 + $0x198] sm:$0xff]
        %v1024 = vld [vmem:[#allocation5 + $0x1a0] sm:$0xff]
        %v1025 = vld [vmem:[#allocation5 + $0x1a8] sm:$0xff]
        %v1026 = vld [vmem:[#allocation5 + $0x1b0] sm:$0xff]
        %v1027 = vld [vmem:[#allocation5 + $0x1b8] sm:$0xff]
        %v1028 = vld [vmem:[#allocation5 + $0x1c0] sm:$0xff]
        %v1029 = vld [vmem:[#allocation5 + $0x1c8] sm:$0xff]
        %v1030 = vld [vmem:[#allocation5 + $0x1d0] sm:$0xff]
        %v1031 = vld [vmem:[#allocation5 + $0x1d8] sm:$0xff]
        %v1032 = vld [vmem:[#allocation5 + $0x1e0] sm:$0xff]
        %v1033 = vld [vmem:[#allocation5 + $0x1e8] sm:$0xff]
        %v1034 = vld [vmem:[#allocation5 + $0x1f0] sm:$0xff]
        %v1035 = vld [vmem:[#allocation5 + $0x1f8] sm:$0xff]
        %vm1036 = vcmp.gt.f32.partialorder %v972, 0.0
        %vm1037 = vcmp.gt.f32.partialorder %v973, 0.0
        %vm1038 = vcmp.gt.f32.partialorder %v974, 0.0
        %vm1039 = vcmp.gt.f32.partialorder %v975, 0.0
        %vm1040 = vcmp.gt.f32.partialorder %v976, 0.0
        %vm1041 = vcmp.gt.f32.partialorder %v977, 0.0
        %vm1042 = vcmp.gt.f32.partialorder %v978, 0.0
        %vm1043 = vcmp.gt.f32.partialorder %v979, 0.0
        %vm1044 = vcmp.gt.f32.partialorder %v980, 0.0
        %vm1045 = vcmp.gt.f32.partialorder %v981, 0.0
        %vm1046 = vcmp.gt.f32.partialorder %v982, 0.0
        %vm1047 = vcmp.gt.f32.partialorder %v983, 0.0
        %vm1048 = vcmp.gt.f32.partialorder %v984, 0.0
        %vm1049 = vcmp.gt.f32.partialorder %v985, 0.0
        %vm1050 = vcmp.gt.f32.partialorder %v986, 0.0
        %vm1051 = vcmp.gt.f32.partialorder %v987, 0.0
        %vm1052 = vcmp.gt.f32.partialorder %v988, 0.0
        %vm1053 = vcmp.gt.f32.partialorder %v989, 0.0
        %vm1054 = vcmp.gt.f32.partialorder %v990, 0.0
        %vm1055 = vcmp.gt.f32.partialorder %v991, 0.0
        %vm1056 = vcmp.gt.f32.partialorder %v992, 0.0
        %vm1057 = vcmp.gt.f32.partialorder %v993, 0.0
        %vm1058 = vcmp.gt.f32.partialorder %v994, 0.0
        %vm1059 = vcmp.gt.f32.partialorder %v995, 0.0
        %vm1060 = vcmp.gt.f32.partialorder %v996, 0.0
        %vm1061 = vcmp.gt.f32.partialorder %v997, 0.0
        %vm1062 = vcmp.gt.f32.partialorder %v998, 0.0
        %vm1063 = vcmp.gt.f32.partialorder %v999, 0.0
        %vm1064 = vcmp.gt.f32.partialorder %v1000, 0.0
        %vm1065 = vcmp.gt.f32.partialorder %v1001, 0.0
        %vm1066 = vcmp.gt.f32.partialorder %v1002, 0.0
        %vm1067 = vcmp.gt.f32.partialorder %v1003, 0.0
        %vm1068 = vcmp.gt.f32.partialorder %v1004, 0.0
        %vm1069 = vcmp.gt.f32.partialorder %v1005, 0.0
        %vm1070 = vcmp.gt.f32.partialorder %v1006, 0.0
        %vm1071 = vcmp.gt.f32.partialorder %v1007, 0.0
        %vm1072 = vcmp.gt.f32.partialorder %v1008, 0.0
        %vm1073 = vcmp.gt.f32.partialorder %v1009, 0.0
        %vm1074 = vcmp.gt.f32.partialorder %v1010, 0.0
        %vm1075 = vcmp.gt.f32.partialorder %v1011, 0.0
        %vm1076 = vcmp.gt.f32.partialorder %v1012, 0.0
        %vm1077 = vcmp.gt.f32.partialorder %v1013, 0.0
        %vm1078 = vcmp.gt.f32.partialorder %v1014, 0.0
        %vm1079 = vcmp.gt.f32.partialorder %v1015, 0.0
        %vm1080 = vcmp.gt.f32.partialorder %v1016, 0.0
        %vm1081 = vcmp.gt.f32.partialorder %v1017, 0.0
        %vm1082 = vcmp.gt.f32.partialorder %v1018, 0.0
        %vm1083 = vcmp.gt.f32.partialorder %v1019, 0.0
        %vm1084 = vcmp.gt.f32.partialorder %v1020, 0.0
        %vm1085 = vcmp.gt.f32.partialorder %v1021, 0.0
        %vm1086 = vcmp.gt.f32.partialorder %v1022, 0.0
        %vm1087 = vcmp.gt.f32.partialorder %v1023, 0.0
        %vm1088 = vcmp.gt.f32.partialorder %v1024, 0.0
        %vm1089 = vcmp.gt.f32.partialorder %v1025, 0.0
        %vm1090 = vcmp.gt.f32.partialorder %v1026, 0.0
        %vm1091 = vcmp.gt.f32.partialorder %v1027, 0.0
        %vm1092 = vcmp.gt.f32.partialorder %v1028, 0.0
        %vm1093 = vcmp.gt.f32.partialorder %v1029, 0.0
        %vm1094 = vcmp.gt.f32.partialorder %v1030, 0.0
        %vm1095 = vcmp.gt.f32.partialorder %v1031, 0.0
        %vm1096 = vcmp.gt.f32.partialorder %v1032, 0.0
        %vm1097 = vcmp.gt.f32.partialorder %v1033, 0.0
        %vm1098 = vcmp.gt.f32.partialorder %v1034, 0.0
        %vm1099 = vcmp.gt.f32.partialorder %v1035, 0.0
        %v1100 = vsel %vm1036, %v764, -1e+30
        %v1101 = vsel %vm1037, %v877, -1e+30
        %v1102 = vsel %vm1038, %v767, -1e+30
        %v1103 = vsel %vm1039, %v880, -1e+30
        %v1104 = vsel %vm1040, %v770, -1e+30
        %v1105 = vsel %vm1041, %v883, -1e+30
        %v1106 = vsel %vm1042, %v773, -1e+30
        %v1107 = vsel %vm1043, %v886, -1e+30
        %v1108 = vsel %vm1044, %v776, -1e+30
        %v1109 = vsel %vm1045, %v889, -1e+30
        %v1110 = vsel %vm1046, %v779, -1e+30
        %v1111 = vsel %vm1047, %v892, -1e+30
        %v1112 = vsel %vm1048, %v782, -1e+30
        %v1113 = vsel %vm1049, %v895, -1e+30
        %v1114 = vsel %vm1050, %v785, -1e+30
        %v1115 = vsel %vm1051, %v898, -1e+30
        %v1116 = vsel %vm1052, %v788, -1e+30
        %v1117 = vsel %vm1053, %v901, -1e+30
        %v1118 = vsel %vm1054, %v791, -1e+30
        %v1119 = vsel %vm1055, %v904, -1e+30
        %v1120 = vsel %vm1056, %v794, -1e+30
        %v1121 = vsel %vm1057, %v907, -1e+30
        %v1122 = vsel %vm1058, %v797, -1e+30
        %v1123 = vsel %vm1059, %v910, -1e+30
        %v1124 = vsel %vm1060, %v800, -1e+30
        %v1125 = vsel %vm1061, %v913, -1e+30
        %v1126 = vsel %vm1062, %v803, -1e+30
        %v1127 = vsel %vm1063, %v916, -1e+30
        %v1128 = vsel %vm1064, %v806, -1e+30
        %v1129 = vsel %vm1065, %v919, -1e+30
        %v1130 = vsel %vm1066, %v809, -1e+30
        %v1131 = vsel %vm1067, %v922, -1e+30
        %v1132 = vsel %vm1068, %v812, -1e+30
        %v1133 = vsel %vm1069, %v925, -1e+30
        %v1134 = vsel %vm1070, %v815, -1e+30
        %v1135 = vsel %vm1071, %v928, -1e+30
        %v1136 = vsel %vm1072, %v818, -1e+30
        %v1137 = vsel %vm1073, %v931, -1e+30
        %v1138 = vsel %vm1074, %v821, -1e+30
        %v1139 = vsel %vm1075, %v934, -1e+30
        %v1140 = vsel %vm1076, %v824, -1e+30
        %v1141 = vsel %vm1077, %v937, -1e+30
        %v1142 = vsel %vm1078, %v827, -1e+30
        %v1143 = vsel %vm1079, %v940, -1e+30
        %v1144 = vsel %vm1080, %v830, -1e+30
        %v1145 = vsel %vm1081, %v943, -1e+30
        %v1146 = vsel %vm1082, %v833, -1e+30
        %v1147 = vsel %vm1083, %v946, -1e+30
        %v1148 = vsel %vm1084, %v836, -1e+30
        %v1149 = vsel %vm1085, %v949, -1e+30
        %v1150 = vsel %vm1086, %v839, -1e+30
        %v1151 = vsel %vm1087, %v952, -1e+30
        %v1152 = vsel %vm1088, %v842, -1e+30
        %v1153 = vsel %vm1089, %v955, -1e+30
        %v1154 = vsel %vm1090, %v845, -1e+30
        %v1155 = vsel %vm1091, %v958, -1e+30
        %v1156 = vsel %vm1092, %v848, -1e+30
        %v1157 = vsel %vm1093, %v961, -1e+30
        %v1158 = vsel %vm1094, %v851, -1e+30
        %v1159 = vsel %vm1095, %v964, -1e+30
        %v1160 = vsel %vm1096, %v854, -1e+30
        %v1161 = vsel %vm1097, %v967, -1e+30
        %v1162 = vsel %vm1098, %v857, -1e+30
        %v1163 = vsel %vm1099, %v970, -1e+30
        %v1164 = vmax.f32 %v1100, %v1101
        %1165 = vmax.xlane.f32.xlu0 %v1164
        %v1166 = vpop.xlane.xlu0 %1165
        %v1167 = vmax.f32 %v1102, %v1103
        %1168 = vmax.xlane.f32.xlu0 %v1167
        %v1169 = vpop.xlane.xlu0 %1168
        %v1170 = vmax.f32 %v1104, %v1105
        %1171 = vmax.xlane.f32.xlu0 %v1170
        %v1172 = vpop.xlane.xlu0 %1171
        %v1173 = vmax.f32 %v1106, %v1107
        %1174 = vmax.xlane.f32.xlu0 %v1173
        %v1175 = vpop.xlane.xlu0 %1174
        %v1176 = vmax.f32 %v1108, %v1109
        %1177 = vmax.xlane.f32.xlu0 %v1176
        %v1178 = vpop.xlane.xlu0 %1177
        %v1179 = vmax.f32 %v1110, %v1111
        %1180 = vmax.xlane.f32.xlu0 %v1179
        %v1181 = vpop.xlane.xlu0 %1180
        %v1182 = vmax.f32 %v1112, %v1113
        %1183 = vmax.xlane.f32.xlu0 %v1182
        %v1184 = vpop.xlane.xlu0 %1183
        %v1185 = vmax.f32 %v1114, %v1115
        %1186 = vmax.xlane.f32.xlu0 %v1185
        %v1187 = vpop.xlane.xlu0 %1186
        %v1188 = vmax.f32 %v1116, %v1117
        %1189 = vmax.xlane.f32.xlu0 %v1188
        %v1190 = vpop.xlane.xlu0 %1189
        %v1191 = vmax.f32 %v1118, %v1119
        %1192 = vmax.xlane.f32.xlu0 %v1191
        %v1193 = vpop.xlane.xlu0 %1192
        %v1194 = vmax.f32 %v1120, %v1121
        %1195 = vmax.xlane.f32.xlu0 %v1194
        %v1196 = vpop.xlane.xlu0 %1195
        %v1197 = vmax.f32 %v1122, %v1123
        %1198 = vmax.xlane.f32.xlu0 %v1197
        %v1199 = vpop.xlane.xlu0 %1198
        %v1200 = vmax.f32 %v1124, %v1125
        %1201 = vmax.xlane.f32.xlu0 %v1200
        %v1202 = vpop.xlane.xlu0 %1201
        %v1203 = vmax.f32 %v1126, %v1127
        %1204 = vmax.xlane.f32.xlu0 %v1203
        %v1205 = vpop.xlane.xlu0 %1204
        %v1206 = vmax.f32 %v1128, %v1129
        %1207 = vmax.xlane.f32.xlu0 %v1206
        %v1208 = vpop.xlane.xlu0 %1207
        %v1209 = vmax.f32 %v1130, %v1131
        %1210 = vmax.xlane.f32.xlu0 %v1209
        %v1211 = vpop.xlane.xlu0 %1210
        %v1212 = vmax.f32 %v1132, %v1133
        %1213 = vmax.xlane.f32.xlu0 %v1212
        %v1214 = vpop.xlane.xlu0 %1213
        %v1215 = vmax.f32 %v1134, %v1135
        %1216 = vmax.xlane.f32.xlu0 %v1215
        %v1217 = vpop.xlane.xlu0 %1216
        %v1218 = vmax.f32 %v1136, %v1137
        %1219 = vmax.xlane.f32.xlu0 %v1218
        %v1220 = vpop.xlane.xlu0 %1219
        %v1221 = vmax.f32 %v1138, %v1139
        %1222 = vmax.xlane.f32.xlu0 %v1221
        %v1223 = vpop.xlane.xlu0 %1222
        %v1224 = vmax.f32 %v1140, %v1141
        %1225 = vmax.xlane.f32.xlu0 %v1224
        %v1226 = vpop.xlane.xlu0 %1225
        %v1227 = vmax.f32 %v1142, %v1143
        %1228 = vmax.xlane.f32.xlu0 %v1227
        %v1229 = vpop.xlane.xlu0 %1228
        %v1230 = vmax.f32 %v1144, %v1145
        %1231 = vmax.xlane.f32.xlu0 %v1230
        %v1232 = vpop.xlane.xlu0 %1231
        %v1233 = vmax.f32 %v1146, %v1147
        %1234 = vmax.xlane.f32.xlu0 %v1233
        %v1235 = vpop.xlane.xlu0 %1234
        %v1236 = vmax.f32 %v1148, %v1149
        %1237 = vmax.xlane.f32.xlu0 %v1236
        %v1238 = vpop.xlane.xlu0 %1237
        %v1239 = vmax.f32 %v1150, %v1151
        %1240 = vmax.xlane.f32.xlu0 %v1239
        %v1241 = vpop.xlane.xlu0 %1240
        %v1242 = vmax.f32 %v1152, %v1153
        %1243 = vmax.xlane.f32.xlu0 %v1242
        %v1244 = vpop.xlane.xlu0 %1243
        %v1245 = vmax.f32 %v1154, %v1155
        %1246 = vmax.xlane.f32.xlu0 %v1245
        %v1247 = vpop.xlane.xlu0 %1246
        %v1248 = vmax.f32 %v1156, %v1157
        %1249 = vmax.xlane.f32.xlu0 %v1248
        %v1250 = vpop.xlane.xlu0 %1249
        %v1251 = vmax.f32 %v1158, %v1159
        %1252 = vmax.xlane.f32.xlu0 %v1251
        %v1253 = vpop.xlane.xlu0 %1252
        %v1254 = vmax.f32 %v1160, %v1161
        %1255 = vmax.xlane.f32.xlu0 %v1254
        %v1256 = vpop.xlane.xlu0 %1255
        %v1257 = vmax.f32 %v1162, %v1163
        %1258 = vmax.xlane.f32.xlu0 %v1257
        %v1259 = vpop.xlane.xlu0 %1258
        %v1260 = vsub.f32 %v1100, %v1166
        %v1261 = vsub.f32 %v1101, %v1166
        %v1262 = vsub.f32 %v1102, %v1169
        %v1263 = vsub.f32 %v1103, %v1169
        %v1264 = vsub.f32 %v1104, %v1172
        %v1265 = vsub.f32 %v1105, %v1172
        %v1266 = vsub.f32 %v1106, %v1175
        %v1267 = vsub.f32 %v1107, %v1175
        %v1268 = vsub.f32 %v1108, %v1178
        %v1269 = vsub.f32 %v1109, %v1178
        %v1270 = vsub.f32 %v1110, %v1181
        %v1271 = vsub.f32 %v1111, %v1181
        %v1272 = vsub.f32 %v1112, %v1184
        %v1273 = vsub.f32 %v1113, %v1184
        %v1274 = vsub.f32 %v1114, %v1187
        %v1275 = vsub.f32 %v1115, %v1187
        %v1276 = vsub.f32 %v1116, %v1190
        %v1277 = vsub.f32 %v1117, %v1190
        %v1278 = vsub.f32 %v1118, %v1193
        %v1279 = vsub.f32 %v1119, %v1193
        %v1280 = vsub.f32 %v1120, %v1196
        %v1281 = vsub.f32 %v1121, %v1196
        %v1282 = vsub.f32 %v1122, %v1199
        %v1283 = vsub.f32 %v1123, %v1199
        %v1284 = vsub.f32 %v1124, %v1202
        %v1285 = vsub.f32 %v1125, %v1202
        %v1286 = vsub.f32 %v1126, %v1205
        %v1287 = vsub.f32 %v1127, %v1205
        %v1288 = vsub.f32 %v1128, %v1208
        %v1289 = vsub.f32 %v1129, %v1208
        %v1290 = vsub.f32 %v1130, %v1211
        %v1291 = vsub.f32 %v1131, %v1211
        %v1292 = vsub.f32 %v1132, %v1214
        %v1293 = vsub.f32 %v1133, %v1214
        %v1294 = vsub.f32 %v1134, %v1217
        %v1295 = vsub.f32 %v1135, %v1217
        %v1296 = vsub.f32 %v1136, %v1220
        %v1297 = vsub.f32 %v1137, %v1220
        %v1298 = vsub.f32 %v1138, %v1223
        %v1299 = vsub.f32 %v1139, %v1223
        %v1300 = vsub.f32 %v1140, %v1226
        %v1301 = vsub.f32 %v1141, %v1226
        %v1302 = vsub.f32 %v1142, %v1229
        %v1303 = vsub.f32 %v1143, %v1229
        %v1304 = vsub.f32 %v1144, %v1232
        %v1305 = vsub.f32 %v1145, %v1232
        %v1306 = vsub.f32 %v1146, %v1235
        %v1307 = vsub.f32 %v1147, %v1235
        %v1308 = vsub.f32 %v1148, %v1238
        %v1309 = vsub.f32 %v1149, %v1238
        %v1310 = vsub.f32 %v1150, %v1241
        %v1311 = vsub.f32 %v1151, %v1241
        %v1312 = vsub.f32 %v1152, %v1244
        %v1313 = vsub.f32 %v1153, %v1244
        %v1314 = vsub.f32 %v1154, %v1247
        %v1315 = vsub.f32 %v1155, %v1247
        %v1316 = vsub.f32 %v1156, %v1250
        %v1317 = vsub.f32 %v1157, %v1250
        %v1318 = vsub.f32 %v1158, %v1253
        %v1319 = vsub.f32 %v1159, %v1253
        %v1320 = vsub.f32 %v1160, %v1256
        %v1321 = vsub.f32 %v1161, %v1256
        %v1322 = vsub.f32 %v1162, %v1259
        %v1323 = vsub.f32 %v1163, %v1259
        %v1324 = vmul.f32 %v1260, 1.442695
        %v1325 = vpow.pop %v1324
        %v1326 = vmul.f32 %v1261, 1.442695
        %v1327 = vpow.pop %v1326
        %v1328 = vmul.f32 %v1262, 1.442695
        %v1329 = vpow.pop %v1328
        %v1330 = vmul.f32 %v1263, 1.442695
        %v1331 = vpow.pop %v1330
        %v1332 = vmul.f32 %v1264, 1.442695
        %v1333 = vpow.pop %v1332
        %v1334 = vmul.f32 %v1265, 1.442695
        %v1335 = vpow.pop %v1334
        %v1336 = vmul.f32 %v1266, 1.442695
        %v1337 = vpow.pop %v1336
        %v1338 = vmul.f32 %v1267, 1.442695
        %v1339 = vpow.pop %v1338
        %v1340 = vmul.f32 %v1268, 1.442695
        %v1341 = vpow.pop %v1340
        %v1342 = vmul.f32 %v1269, 1.442695
        %v1343 = vpow.pop %v1342
        %v1344 = vmul.f32 %v1270, 1.442695
        %v1345 = vpow.pop %v1344
        %v1346 = vmul.f32 %v1271, 1.442695
        %v1347 = vpow.pop %v1346
        %v1348 = vmul.f32 %v1272, 1.442695
        %v1349 = vpow.pop %v1348
        %v1350 = vmul.f32 %v1273, 1.442695
        %v1351 = vpow.pop %v1350
        %v1352 = vmul.f32 %v1274, 1.442695
        %v1353 = vpow.pop %v1352
        %v1354 = vmul.f32 %v1275, 1.442695
        %v1355 = vpow.pop %v1354
        %v1356 = vmul.f32 %v1276, 1.442695
        %v1357 = vpow.pop %v1356
        %v1358 = vmul.f32 %v1277, 1.442695
        %v1359 = vpow.pop %v1358
        %v1360 = vmul.f32 %v1278, 1.442695
        %v1361 = vpow.pop %v1360
        %v1362 = vmul.f32 %v1279, 1.442695
        %v1363 = vpow.pop %v1362
        %v1364 = vmul.f32 %v1280, 1.442695
        %v1365 = vpow.pop %v1364
        %v1366 = vmul.f32 %v1281, 1.442695
        %v1367 = vpow.pop %v1366
        %v1368 = vmul.f32 %v1282, 1.442695
        %v1369 = vpow.pop %v1368
        %v1370 = vmul.f32 %v1283, 1.442695
        %v1371 = vpow.pop %v1370
        %v1372 = vmul.f32 %v1284, 1.442695
        %v1373 = vpow.pop %v1372
        %v1374 = vmul.f32 %v1285, 1.442695
        %v1375 = vpow.pop %v1374
        %v1376 = vmul.f32 %v1286, 1.442695
        %v1377 = vpow.pop %v1376
        %v1378 = vmul.f32 %v1287, 1.442695
        %v1379 = vpow.pop %v1378
        %v1380 = vmul.f32 %v1288, 1.442695
        %v1381 = vpow.pop %v1380
        %v1382 = vmul.f32 %v1289, 1.442695
        %v1383 = vpow.pop %v1382
        %v1384 = vmul.f32 %v1290, 1.442695
        %v1385 = vpow.pop %v1384
        %v1386 = vmul.f32 %v1291, 1.442695
        %v1387 = vpow.pop %v1386
        %v1388 = vmul.f32 %v1292, 1.442695
        %v1389 = vpow.pop %v1388
        %v1390 = vmul.f32 %v1293, 1.442695
        %v1391 = vpow.pop %v1390
        %v1392 = vmul.f32 %v1294, 1.442695
        %v1393 = vpow.pop %v1392
        %v1394 = vmul.f32 %v1295, 1.442695
        %v1395 = vpow.pop %v1394
        %v1396 = vmul.f32 %v1296, 1.442695
        %v1397 = vpow.pop %v1396
        %v1398 = vmul.f32 %v1297, 1.442695
        %v1399 = vpow.pop %v1398
        %v1400 = vmul.f32 %v1298, 1.442695
        %v1401 = vpow.pop %v1400
        %v1402 = vmul.f32 %v1299, 1.442695
        %v1403 = vpow.pop %v1402
        %v1404 = vmul.f32 %v1300, 1.442695
        %v1405 = vpow.pop %v1404
        %v1406 = vmul.f32 %v1301, 1.442695
        %v1407 = vpow.pop %v1406
        %v1408 = vmul.f32 %v1302, 1.442695
        %v1409 = vpow.pop %v1408
        %v1410 = vmul.f32 %v1303, 1.442695
        %v1411 = vpow.pop %v1410
        %v1412 = vmul.f32 %v1304, 1.442695
        %v1413 = vpow.pop %v1412
        %v1414 = vmul.f32 %v1305, 1.442695
        %v1415 = vpow.pop %v1414
        %v1416 = vmul.f32 %v1306, 1.442695
        %v1417 = vpow.pop %v1416
        %v1418 = vmul.f32 %v1307, 1.442695
        %v1419 = vpow.pop %v1418
        %v1420 = vmul.f32 %v1308, 1.442695
        %v1421 = vpow.pop %v1420
        %v1422 = vmul.f32 %v1309, 1.442695
        %v1423 = vpow.pop %v1422
        %v1424 = vmul.f32 %v1310, 1.442695
        %v1425 = vpow.pop %v1424
        %v1426 = vmul.f32 %v1311, 1.442695
        %v1427 = vpow.pop %v1426
        %v1428 = vmul.f32 %v1312, 1.442695
        %v1429 = vpow.pop %v1428
        %v1430 = vmul.f32 %v1313, 1.442695
        %v1431 = vpow.pop %v1430
        %v1432 = vmul.f32 %v1314, 1.442695
        %v1433 = vpow.pop %v1432
        %v1434 = vmul.f32 %v1315, 1.442695
        %v1435 = vpow.pop %v1434
        %v1436 = vmul.f32 %v1316, 1.442695
        %v1437 = vpow.pop %v1436
        %v1438 = vmul.f32 %v1317, 1.442695
        %v1439 = vpow.pop %v1438
        %v1440 = vmul.f32 %v1318, 1.442695
        %v1441 = vpow.pop %v1440
        %v1442 = vmul.f32 %v1319, 1.442695
        %v1443 = vpow.pop %v1442
        %v1444 = vmul.f32 %v1320, 1.442695
        %v1445 = vpow.pop %v1444
        %v1446 = vmul.f32 %v1321, 1.442695
        %v1447 = vpow.pop %v1446
        %v1448 = vmul.f32 %v1322, 1.442695
        %v1449 = vpow.pop %v1448
        %v1450 = vmul.f32 %v1323, 1.442695
        %v1451 = vpow.pop %v1450
        %v1452 = vmul.f32 %v1325, %v972
        %v1453 = vmul.f32 %v1327, %v973
        %v1454 = vmul.f32 %v1329, %v974
        %v1455 = vmul.f32 %v1331, %v975
        %v1456 = vmul.f32 %v1333, %v976
        %v1457 = vmul.f32 %v1335, %v977
        %v1458 = vmul.f32 %v1337, %v978
        %v1459 = vmul.f32 %v1339, %v979
        %v1460 = vmul.f32 %v1341, %v980
        %v1461 = vmul.f32 %v1343, %v981
        %v1462 = vmul.f32 %v1345, %v982
        %v1463 = vmul.f32 %v1347, %v983
        %v1464 = vmul.f32 %v1349, %v984
        %v1465 = vmul.f32 %v1351, %v985
        %v1466 = vmul.f32 %v1353, %v986
        %v1467 = vmul.f32 %v1355, %v987
        %v1468 = vmul.f32 %v1357, %v988
        %v1469 = vmul.f32 %v1359, %v989
        %v1470 = vmul.f32 %v1361, %v990
        %v1471 = vmul.f32 %v1363, %v991
        %v1472 = vmul.f32 %v1365, %v992
        %v1473 = vmul.f32 %v1367, %v993
        %v1474 = vmul.f32 %v1369, %v994
        %v1475 = vmul.f32 %v1371, %v995
        %v1476 = vmul.f32 %v1373, %v996
        %v1477 = vmul.f32 %v1375, %v997
        %v1478 = vmul.f32 %v1377, %v998
        %v1479 = vmul.f32 %v1379, %v999
        %v1480 = vmul.f32 %v1381, %v1000
        %v1481 = vmul.f32 %v1383, %v1001
        %v1482 = vmul.f32 %v1385, %v1002
        %v1483 = vmul.f32 %v1387, %v1003
        %v1484 = vmul.f32 %v1389, %v1004
        %v1485 = vmul.f32 %v1391, %v1005
        %v1486 = vmul.f32 %v1393, %v1006
        %v1487 = vmul.f32 %v1395, %v1007
        %v1488 = vmul.f32 %v1397, %v1008
        %v1489 = vmul.f32 %v1399, %v1009
        %v1490 = vmul.f32 %v1401, %v1010
        %v1491 = vmul.f32 %v1403, %v1011
        %v1492 = vmul.f32 %v1405, %v1012
        %v1493 = vmul.f32 %v1407, %v1013
        %v1494 = vmul.f32 %v1409, %v1014
        %v1495 = vmul.f32 %v1411, %v1015
        %v1496 = vmul.f32 %v1413, %v1016
        %v1497 = vmul.f32 %v1415, %v1017
        %v1498 = vmul.f32 %v1417, %v1018
        %v1499 = vmul.f32 %v1419, %v1019
        %v1500 = vmul.f32 %v1421, %v1020
        %v1501 = vmul.f32 %v1423, %v1021
        %v1502 = vmul.f32 %v1425, %v1022
        %v1503 = vmul.f32 %v1427, %v1023
        %v1504 = vmul.f32 %v1429, %v1024
        %v1505 = vmul.f32 %v1431, %v1025
        %v1506 = vmul.f32 %v1433, %v1026
        %v1507 = vmul.f32 %v1435, %v1027
        %v1508 = vmul.f32 %v1437, %v1028
        %v1509 = vmul.f32 %v1439, %v1029
        %v1510 = vmul.f32 %v1441, %v1030
        %v1511 = vmul.f32 %v1443, %v1031
        %v1512 = vmul.f32 %v1445, %v1032
        %v1513 = vmul.f32 %v1447, %v1033
        %v1514 = vmul.f32 %v1449, %v1034
        %v1515 = vmul.f32 %v1451, %v1035
        %v1516 = vadd.f32 %v1452, %v1453
        %1517 = vadd.xlane.f32.xlu0 %v1516
        %v1518 = vpop.xlane.xlu0 %1517
        %v1519 = vadd.f32 %v1454, %v1455
        %1520 = vadd.xlane.f32.xlu0 %v1519
        %v1521 = vpop.xlane.xlu0 %1520
        %v1522 = vadd.f32 %v1456, %v1457
        %1523 = vadd.xlane.f32.xlu0 %v1522
        %v1524 = vpop.xlane.xlu0 %1523
        %v1525 = vadd.f32 %v1458, %v1459
        %1526 = vadd.xlane.f32.xlu0 %v1525
        %v1527 = vpop.xlane.xlu0 %1526
        %v1528 = vadd.f32 %v1460, %v1461
        %1529 = vadd.xlane.f32.xlu0 %v1528
        %v1530 = vpop.xlane.xlu0 %1529
        %v1531 = vadd.f32 %v1462, %v1463
        %1532 = vadd.xlane.f32.xlu0 %v1531
        %v1533 = vpop.xlane.xlu0 %1532
        %v1534 = vadd.f32 %v1464, %v1465
        %1535 = vadd.xlane.f32.xlu0 %v1534
        %v1536 = vpop.xlane.xlu0 %1535
        %v1537 = vadd.f32 %v1466, %v1467
        %1538 = vadd.xlane.f32.xlu0 %v1537
        %v1539 = vpop.xlane.xlu0 %1538
        %v1540 = vadd.f32 %v1468, %v1469
        %1541 = vadd.xlane.f32.xlu0 %v1540
        %v1542 = vpop.xlane.xlu0 %1541
        %v1543 = vadd.f32 %v1470, %v1471
        %1544 = vadd.xlane.f32.xlu0 %v1543
        %v1545 = vpop.xlane.xlu0 %1544
        %v1546 = vadd.f32 %v1472, %v1473
        %1547 = vadd.xlane.f32.xlu0 %v1546
        %v1548 = vpop.xlane.xlu0 %1547
        %v1549 = vadd.f32 %v1474, %v1475
        %1550 = vadd.xlane.f32.xlu0 %v1549
        %v1551 = vpop.xlane.xlu0 %1550
        %v1552 = vadd.f32 %v1476, %v1477
        %1553 = vadd.xlane.f32.xlu0 %v1552
        %v1554 = vpop.xlane.xlu0 %1553
        %v1555 = vadd.f32 %v1478, %v1479
        %1556 = vadd.xlane.f32.xlu0 %v1555
        %v1557 = vpop.xlane.xlu0 %1556
        %v1558 = vadd.f32 %v1480, %v1481
        %1559 = vadd.xlane.f32.xlu0 %v1558
        %v1560 = vpop.xlane.xlu0 %1559
        %v1561 = vadd.f32 %v1482, %v1483
        %1562 = vadd.xlane.f32.xlu0 %v1561
        %v1563 = vpop.xlane.xlu0 %1562
        %v1564 = vadd.f32 %v1484, %v1485
        %1565 = vadd.xlane.f32.xlu0 %v1564
        %v1566 = vpop.xlane.xlu0 %1565
        %v1567 = vadd.f32 %v1486, %v1487
        %1568 = vadd.xlane.f32.xlu0 %v1567
        %v1569 = vpop.xlane.xlu0 %1568
        %v1570 = vadd.f32 %v1488, %v1489
        %1571 = vadd.xlane.f32.xlu0 %v1570
        %v1572 = vpop.xlane.xlu0 %1571
        %v1573 = vadd.f32 %v1490, %v1491
        %1574 = vadd.xlane.f32.xlu0 %v1573
        %v1575 = vpop.xlane.xlu0 %1574
        %v1576 = vadd.f32 %v1492, %v1493
        %1577 = vadd.xlane.f32.xlu0 %v1576
        %v1578 = vpop.xlane.xlu0 %1577
        %v1579 = vadd.f32 %v1494, %v1495
        %1580 = vadd.xlane.f32.xlu0 %v1579
        %v1581 = vpop.xlane.xlu0 %1580
        %v1582 = vadd.f32 %v1496, %v1497
        %1583 = vadd.xlane.f32.xlu0 %v1582
        %v1584 = vpop.xlane.xlu0 %1583
        %v1585 = vadd.f32 %v1498, %v1499
        %1586 = vadd.xlane.f32.xlu0 %v1585
        %v1587 = vpop.xlane.xlu0 %1586
        %v1588 = vadd.f32 %v1500, %v1501
        %1589 = vadd.xlane.f32.xlu0 %v1588
        %v1590 = vpop.xlane.xlu0 %1589
        %v1591 = vadd.f32 %v1502, %v1503
        %1592 = vadd.xlane.f32.xlu0 %v1591
        %v1593 = vpop.xlane.xlu0 %1592
        %v1594 = vadd.f32 %v1504, %v1505
        %1595 = vadd.xlane.f32.xlu0 %v1594
        %v1596 = vpop.xlane.xlu0 %1595
        %v1597 = vadd.f32 %v1506, %v1507
        %1598 = vadd.xlane.f32.xlu0 %v1597
        %v1599 = vpop.xlane.xlu0 %1598
        %v1600 = vadd.f32 %v1508, %v1509
        %1601 = vadd.xlane.f32.xlu0 %v1600
        %v1602 = vpop.xlane.xlu0 %1601
        %v1603 = vadd.f32 %v1510, %v1511
        %1604 = vadd.xlane.f32.xlu0 %v1603
        %v1605 = vpop.xlane.xlu0 %1604
        %v1606 = vadd.f32 %v1512, %v1513
        %1607 = vadd.xlane.f32.xlu0 %v1606
        %v1608 = vpop.xlane.xlu0 %1607
        %v1609 = vadd.f32 %v1514, %v1515
        %1610 = vadd.xlane.f32.xlu0 %v1609
        %v1611 = vpop.xlane.xlu0 %1610
        %v1612 = vrcp.pop %v1518
        %v1613 = vmul.f32 %v1518, %v1612
        %v1614 = vsub.f32 1.0, %v1613
        %v1615 = vmul.f32 %v1612, %v1614
        %v1616 = vadd.f32 %v1612, %v1615
        %vm1617 = vweird.f32 %v1518
        %vm1618 = vweird.f32 %v1612
        %vm1619 = vmor %vm1617, %vm1618
        %v1620 = vsel %vm1619, %v1612, %v1616
        %v1621 = vand.u32 2147483647, %v1518
        %vm1622 = vcmp.eq.f32.partialorder %v1621, 8.507059e+37
        %v1623 = vand.u32 %v1518, 2147483648
        %v1624 = vor.u32 1.1754944e-38, %v1623
        %v1625 = vsel %vm1622, %v1624, %v1620
        %v1626 = vrcp.pop %v1521
        %v1627 = vmul.f32 %v1521, %v1626
        %v1628 = vsub.f32 1.0, %v1627
        %v1629 = vmul.f32 %v1626, %v1628
        %v1630 = vadd.f32 %v1626, %v1629
        %vm1631 = vweird.f32 %v1521
        %vm1632 = vweird.f32 %v1626
        %vm1633 = vmor %vm1631, %vm1632
        %v1634 = vsel %vm1633, %v1626, %v1630
        %v1635 = vand.u32 2147483647, %v1521
        %vm1636 = vcmp.eq.f32.partialorder %v1635, 8.507059e+37
        %v1637 = vand.u32 %v1521, 2147483648
        %v1638 = vor.u32 1.1754944e-38, %v1637
        %v1639 = vsel %vm1636, %v1638, %v1634
        %v1640 = vrcp.pop %v1524
        %v1641 = vmul.f32 %v1524, %v1640
        %v1642 = vsub.f32 1.0, %v1641
        %v1643 = vmul.f32 %v1640, %v1642
        %v1644 = vadd.f32 %v1640, %v1643
        %vm1645 = vweird.f32 %v1524
        %vm1646 = vweird.f32 %v1640
        %vm1647 = vmor %vm1645, %vm1646
        %v1648 = vsel %vm1647, %v1640, %v1644
        %v1649 = vand.u32 2147483647, %v1524
        %vm1650 = vcmp.eq.f32.partialorder %v1649, 8.507059e+37
        %v1651 = vand.u32 %v1524, 2147483648
        %v1652 = vor.u32 1.1754944e-38, %v1651
        %v1653 = vsel %vm1650, %v1652, %v1648
        %v1654 = vrcp.pop %v1527
        %v1655 = vmul.f32 %v1527, %v1654
        %v1656 = vsub.f32 1.0, %v1655
        %v1657 = vmul.f32 %v1654, %v1656
        %v1658 = vadd.f32 %v1654, %v1657
        %vm1659 = vweird.f32 %v1527
        %vm1660 = vweird.f32 %v1654
        %vm1661 = vmor %vm1659, %vm1660
        %v1662 = vsel %vm1661, %v1654, %v1658
        %v1663 = vand.u32 2147483647, %v1527
        %vm1664 = vcmp.eq.f32.partialorder %v1663, 8.507059e+37
        %v1665 = vand.u32 %v1527, 2147483648
        %v1666 = vor.u32 1.1754944e-38, %v1665
        %v1667 = vsel %vm1664, %v1666, %v1662
        %v1668 = vrcp.pop %v1530
        %v1669 = vmul.f32 %v1530, %v1668
        %v1670 = vsub.f32 1.0, %v1669
        %v1671 = vmul.f32 %v1668, %v1670
        %v1672 = vadd.f32 %v1668, %v1671
        %vm1673 = vweird.f32 %v1530
        %vm1674 = vweird.f32 %v1668
        %vm1675 = vmor %vm1673, %vm1674
        %v1676 = vsel %vm1675, %v1668, %v1672
        %v1677 = vand.u32 2147483647, %v1530
        %vm1678 = vcmp.eq.f32.partialorder %v1677, 8.507059e+37
        %v1679 = vand.u32 %v1530, 2147483648
        %v1680 = vor.u32 1.1754944e-38, %v1679
        %v1681 = vsel %vm1678, %v1680, %v1676
        %v1682 = vrcp.pop %v1533
        %v1683 = vmul.f32 %v1533, %v1682
        %v1684 = vsub.f32 1.0, %v1683
        %v1685 = vmul.f32 %v1682, %v1684
        %v1686 = vadd.f32 %v1682, %v1685
        %vm1687 = vweird.f32 %v1533
        %vm1688 = vweird.f32 %v1682
        %vm1689 = vmor %vm1687, %vm1688
        %v1690 = vsel %vm1689, %v1682, %v1686
        %v1691 = vand.u32 2147483647, %v1533
        %vm1692 = vcmp.eq.f32.partialorder %v1691, 8.507059e+37
        %v1693 = vand.u32 %v1533, 2147483648
        %v1694 = vor.u32 1.1754944e-38, %v1693
        %v1695 = vsel %vm1692, %v1694, %v1690
        %v1696 = vrcp.pop %v1536
        %v1697 = vmul.f32 %v1536, %v1696
        %v1698 = vsub.f32 1.0, %v1697
        %v1699 = vmul.f32 %v1696, %v1698
        %v1700 = vadd.f32 %v1696, %v1699
        %vm1701 = vweird.f32 %v1536
        %vm1702 = vweird.f32 %v1696
        %vm1703 = vmor %vm1701, %vm1702
        %v1704 = vsel %vm1703, %v1696, %v1700
        %v1705 = vand.u32 2147483647, %v1536
        %vm1706 = vcmp.eq.f32.partialorder %v1705, 8.507059e+37
        %v1707 = vand.u32 %v1536, 2147483648
        %v1708 = vor.u32 1.1754944e-38, %v1707
        %v1709 = vsel %vm1706, %v1708, %v1704
        %v1710 = vrcp.pop %v1539
        %v1711 = vmul.f32 %v1539, %v1710
        %v1712 = vsub.f32 1.0, %v1711
        %v1713 = vmul.f32 %v1710, %v1712
        %v1714 = vadd.f32 %v1710, %v1713
        %vm1715 = vweird.f32 %v1539
        %vm1716 = vweird.f32 %v1710
        %vm1717 = vmor %vm1715, %vm1716
        %v1718 = vsel %vm1717, %v1710, %v1714
        %v1719 = vand.u32 2147483647, %v1539
        %vm1720 = vcmp.eq.f32.partialorder %v1719, 8.507059e+37
        %v1721 = vand.u32 %v1539, 2147483648
        %v1722 = vor.u32 1.1754944e-38, %v1721
        %v1723 = vsel %vm1720, %v1722, %v1718
        %v1724 = vrcp.pop %v1542
        %v1725 = vmul.f32 %v1542, %v1724
        %v1726 = vsub.f32 1.0, %v1725
        %v1727 = vmul.f32 %v1724, %v1726
        %v1728 = vadd.f32 %v1724, %v1727
        %vm1729 = vweird.f32 %v1542
        %vm1730 = vweird.f32 %v1724
        %vm1731 = vmor %vm1729, %vm1730
        %v1732 = vsel %vm1731, %v1724, %v1728
        %v1733 = vand.u32 2147483647, %v1542
        %vm1734 = vcmp.eq.f32.partialorder %v1733, 8.507059e+37
        %v1735 = vand.u32 %v1542, 2147483648
        %v1736 = vor.u32 1.1754944e-38, %v1735
        %v1737 = vsel %vm1734, %v1736, %v1732
        %v1738 = vrcp.pop %v1545
        %v1739 = vmul.f32 %v1545, %v1738
        %v1740 = vsub.f32 1.0, %v1739
        %v1741 = vmul.f32 %v1738, %v1740
        %v1742 = vadd.f32 %v1738, %v1741
        %vm1743 = vweird.f32 %v1545
        %vm1744 = vweird.f32 %v1738
        %vm1745 = vmor %vm1743, %vm1744
        %v1746 = vsel %vm1745, %v1738, %v1742
        %v1747 = vand.u32 2147483647, %v1545
        %vm1748 = vcmp.eq.f32.partialorder %v1747, 8.507059e+37
        %v1749 = vand.u32 %v1545, 2147483648
        %v1750 = vor.u32 1.1754944e-38, %v1749
        %v1751 = vsel %vm1748, %v1750, %v1746
        %v1752 = vrcp.pop %v1548
        %v1753 = vmul.f32 %v1548, %v1752
        %v1754 = vsub.f32 1.0, %v1753
        %v1755 = vmul.f32 %v1752, %v1754
        %v1756 = vadd.f32 %v1752, %v1755
        %vm1757 = vweird.f32 %v1548
        %vm1758 = vweird.f32 %v1752
        %vm1759 = vmor %vm1757, %vm1758
        %v1760 = vsel %vm1759, %v1752, %v1756
        %v1761 = vand.u32 2147483647, %v1548
        %vm1762 = vcmp.eq.f32.partialorder %v1761, 8.507059e+37
        %v1763 = vand.u32 %v1548, 2147483648
        %v1764 = vor.u32 1.1754944e-38, %v1763
        %v1765 = vsel %vm1762, %v1764, %v1760
        %v1766 = vrcp.pop %v1551
        %v1767 = vmul.f32 %v1551, %v1766
        %v1768 = vsub.f32 1.0, %v1767
        %v1769 = vmul.f32 %v1766, %v1768
        %v1770 = vadd.f32 %v1766, %v1769
        %vm1771 = vweird.f32 %v1551
        %vm1772 = vweird.f32 %v1766
        %vm1773 = vmor %vm1771, %vm1772
        %v1774 = vsel %vm1773, %v1766, %v1770
        %v1775 = vand.u32 2147483647, %v1551
        %vm1776 = vcmp.eq.f32.partialorder %v1775, 8.507059e+37
        %v1777 = vand.u32 %v1551, 2147483648
        %v1778 = vor.u32 1.1754944e-38, %v1777
        %v1779 = vsel %vm1776, %v1778, %v1774
        %v1780 = vrcp.pop %v1554
        %v1781 = vmul.f32 %v1554, %v1780
        %v1782 = vsub.f32 1.0, %v1781
        %v1783 = vmul.f32 %v1780, %v1782
        %v1784 = vadd.f32 %v1780, %v1783
        %vm1785 = vweird.f32 %v1554
        %vm1786 = vweird.f32 %v1780
        %vm1787 = vmor %vm1785, %vm1786
        %v1788 = vsel %vm1787, %v1780, %v1784
        %v1789 = vand.u32 2147483647, %v1554
        %vm1790 = vcmp.eq.f32.partialorder %v1789, 8.507059e+37
        %v1791 = vand.u32 %v1554, 2147483648
        %v1792 = vor.u32 1.1754944e-38, %v1791
        %v1793 = vsel %vm1790, %v1792, %v1788
        %v1794 = vrcp.pop %v1557
        %v1795 = vmul.f32 %v1557, %v1794
        %v1796 = vsub.f32 1.0, %v1795
        %v1797 = vmul.f32 %v1794, %v1796
        %v1798 = vadd.f32 %v1794, %v1797
        %vm1799 = vweird.f32 %v1557
        %vm1800 = vweird.f32 %v1794
        %vm1801 = vmor %vm1799, %vm1800
        %v1802 = vsel %vm1801, %v1794, %v1798
        %v1803 = vand.u32 2147483647, %v1557
        %vm1804 = vcmp.eq.f32.partialorder %v1803, 8.507059e+37
        %v1805 = vand.u32 %v1557, 2147483648
        %v1806 = vor.u32 1.1754944e-38, %v1805
        %v1807 = vsel %vm1804, %v1806, %v1802
        %v1808 = vrcp.pop %v1560
        %v1809 = vmul.f32 %v1560, %v1808
        %v1810 = vsub.f32 1.0, %v1809
        %v1811 = vmul.f32 %v1808, %v1810
        %v1812 = vadd.f32 %v1808, %v1811
        %vm1813 = vweird.f32 %v1560
        %vm1814 = vweird.f32 %v1808
        %vm1815 = vmor %vm1813, %vm1814
        %v1816 = vsel %vm1815, %v1808, %v1812
        %v1817 = vand.u32 2147483647, %v1560
        %vm1818 = vcmp.eq.f32.partialorder %v1817, 8.507059e+37
        %v1819 = vand.u32 %v1560, 2147483648
        %v1820 = vor.u32 1.1754944e-38, %v1819
        %v1821 = vsel %vm1818, %v1820, %v1816
        %v1822 = vrcp.pop %v1563
        %v1823 = vmul.f32 %v1563, %v1822
        %v1824 = vsub.f32 1.0, %v1823
        %v1825 = vmul.f32 %v1822, %v1824
        %v1826 = vadd.f32 %v1822, %v1825
        %vm1827 = vweird.f32 %v1563
        %vm1828 = vweird.f32 %v1822
        %vm1829 = vmor %vm1827, %vm1828
        %v1830 = vsel %vm1829, %v1822, %v1826
        %v1831 = vand.u32 2147483647, %v1563
        %vm1832 = vcmp.eq.f32.partialorder %v1831, 8.507059e+37
        %v1833 = vand.u32 %v1563, 2147483648
        %v1834 = vor.u32 1.1754944e-38, %v1833
        %v1835 = vsel %vm1832, %v1834, %v1830
        %v1836 = vrcp.pop %v1566
        %v1837 = vmul.f32 %v1566, %v1836
        %v1838 = vsub.f32 1.0, %v1837
        %v1839 = vmul.f32 %v1836, %v1838
        %v1840 = vadd.f32 %v1836, %v1839
        %vm1841 = vweird.f32 %v1566
        %vm1842 = vweird.f32 %v1836
        %vm1843 = vmor %vm1841, %vm1842
        %v1844 = vsel %vm1843, %v1836, %v1840
        %v1845 = vand.u32 2147483647, %v1566
        %vm1846 = vcmp.eq.f32.partialorder %v1845, 8.507059e+37
        %v1847 = vand.u32 %v1566, 2147483648
        %v1848 = vor.u32 1.1754944e-38, %v1847
        %v1849 = vsel %vm1846, %v1848, %v1844
        %v1850 = vrcp.pop %v1569
        %v1851 = vmul.f32 %v1569, %v1850
        %v1852 = vsub.f32 1.0, %v1851
        %v1853 = vmul.f32 %v1850, %v1852
        %v1854 = vadd.f32 %v1850, %v1853
        %vm1855 = vweird.f32 %v1569
        %vm1856 = vweird.f32 %v1850
        %vm1857 = vmor %vm1855, %vm1856
        %v1858 = vsel %vm1857, %v1850, %v1854
        %v1859 = vand.u32 2147483647, %v1569
        %vm1860 = vcmp.eq.f32.partialorder %v1859, 8.507059e+37
        %v1861 = vand.u32 %v1569, 2147483648
        %v1862 = vor.u32 1.1754944e-38, %v1861
        %v1863 = vsel %vm1860, %v1862, %v1858
        %v1864 = vrcp.pop %v1572
        %v1865 = vmul.f32 %v1572, %v1864
        %v1866 = vsub.f32 1.0, %v1865
        %v1867 = vmul.f32 %v1864, %v1866
        %v1868 = vadd.f32 %v1864, %v1867
        %vm1869 = vweird.f32 %v1572
        %vm1870 = vweird.f32 %v1864
        %vm1871 = vmor %vm1869, %vm1870
        %v1872 = vsel %vm1871, %v1864, %v1868
        %v1873 = vand.u32 2147483647, %v1572
        %vm1874 = vcmp.eq.f32.partialorder %v1873, 8.507059e+37
        %v1875 = vand.u32 %v1572, 2147483648
        %v1876 = vor.u32 1.1754944e-38, %v1875
        %v1877 = vsel %vm1874, %v1876, %v1872
        %v1878 = vrcp.pop %v1575
        %v1879 = vmul.f32 %v1575, %v1878
        %v1880 = vsub.f32 1.0, %v1879
        %v1881 = vmul.f32 %v1878, %v1880
        %v1882 = vadd.f32 %v1878, %v1881
        %vm1883 = vweird.f32 %v1575
        %vm1884 = vweird.f32 %v1878
        %vm1885 = vmor %vm1883, %vm1884
        %v1886 = vsel %vm1885, %v1878, %v1882
        %v1887 = vand.u32 2147483647, %v1575
        %vm1888 = vcmp.eq.f32.partialorder %v1887, 8.507059e+37
        %v1889 = vand.u32 %v1575, 2147483648
        %v1890 = vor.u32 1.1754944e-38, %v1889
        %v1891 = vsel %vm1888, %v1890, %v1886
        %v1892 = vrcp.pop %v1578
        %v1893 = vmul.f32 %v1578, %v1892
        %v1894 = vsub.f32 1.0, %v1893
        %v1895 = vmul.f32 %v1892, %v1894
        %v1896 = vadd.f32 %v1892, %v1895
        %vm1897 = vweird.f32 %v1578
        %vm1898 = vweird.f32 %v1892
        %vm1899 = vmor %vm1897, %vm1898
        %v1900 = vsel %vm1899, %v1892, %v1896
        %v1901 = vand.u32 2147483647, %v1578
        %vm1902 = vcmp.eq.f32.partialorder %v1901, 8.507059e+37
        %v1903 = vand.u32 %v1578, 2147483648
        %v1904 = vor.u32 1.1754944e-38, %v1903
        %v1905 = vsel %vm1902, %v1904, %v1900
        %v1906 = vrcp.pop %v1581
        %v1907 = vmul.f32 %v1581, %v1906
        %v1908 = vsub.f32 1.0, %v1907
        %v1909 = vmul.f32 %v1906, %v1908
        %v1910 = vadd.f32 %v1906, %v1909
        %vm1911 = vweird.f32 %v1581
        %vm1912 = vweird.f32 %v1906
        %vm1913 = vmor %vm1911, %vm1912
        %v1914 = vsel %vm1913, %v1906, %v1910
        %v1915 = vand.u32 2147483647, %v1581
        %vm1916 = vcmp.eq.f32.partialorder %v1915, 8.507059e+37
        %v1917 = vand.u32 %v1581, 2147483648
        %v1918 = vor.u32 1.1754944e-38, %v1917
        %v1919 = vsel %vm1916, %v1918, %v1914
        %v1920 = vrcp.pop %v1584
        %v1921 = vmul.f32 %v1584, %v1920
        %v1922 = vsub.f32 1.0, %v1921
        %v1923 = vmul.f32 %v1920, %v1922
        %v1924 = vadd.f32 %v1920, %v1923
        %vm1925 = vweird.f32 %v1584
        %vm1926 = vweird.f32 %v1920
        %vm1927 = vmor %vm1925, %vm1926
        %v1928 = vsel %vm1927, %v1920, %v1924
        %v1929 = vand.u32 2147483647, %v1584
        %vm1930 = vcmp.eq.f32.partialorder %v1929, 8.507059e+37
        %v1931 = vand.u32 %v1584, 2147483648
        %v1932 = vor.u32 1.1754944e-38, %v1931
        %v1933 = vsel %vm1930, %v1932, %v1928
        %v1934 = vrcp.pop %v1587
        %v1935 = vmul.f32 %v1587, %v1934
        %v1936 = vsub.f32 1.0, %v1935
        %v1937 = vmul.f32 %v1934, %v1936
        %v1938 = vadd.f32 %v1934, %v1937
        %vm1939 = vweird.f32 %v1587
        %vm1940 = vweird.f32 %v1934
        %vm1941 = vmor %vm1939, %vm1940
        %v1942 = vsel %vm1941, %v1934, %v1938
        %v1943 = vand.u32 2147483647, %v1587
        %vm1944 = vcmp.eq.f32.partialorder %v1943, 8.507059e+37
        %v1945 = vand.u32 %v1587, 2147483648
        %v1946 = vor.u32 1.1754944e-38, %v1945
        %v1947 = vsel %vm1944, %v1946, %v1942
        %v1948 = vrcp.pop %v1590
        %v1949 = vmul.f32 %v1590, %v1948
        %v1950 = vsub.f32 1.0, %v1949
        %v1951 = vmul.f32 %v1948, %v1950
        %v1952 = vadd.f32 %v1948, %v1951
        %vm1953 = vweird.f32 %v1590
        %vm1954 = vweird.f32 %v1948
        %vm1955 = vmor %vm1953, %vm1954
        %v1956 = vsel %vm1955, %v1948, %v1952
        %v1957 = vand.u32 2147483647, %v1590
        %vm1958 = vcmp.eq.f32.partialorder %v1957, 8.507059e+37
        %v1959 = vand.u32 %v1590, 2147483648
        %v1960 = vor.u32 1.1754944e-38, %v1959
        %v1961 = vsel %vm1958, %v1960, %v1956
        %v1962 = vrcp.pop %v1593
        %v1963 = vmul.f32 %v1593, %v1962
        %v1964 = vsub.f32 1.0, %v1963
        %v1965 = vmul.f32 %v1962, %v1964
        %v1966 = vadd.f32 %v1962, %v1965
        %vm1967 = vweird.f32 %v1593
        %vm1968 = vweird.f32 %v1962
        %vm1969 = vmor %vm1967, %vm1968
        %v1970 = vsel %vm1969, %v1962, %v1966
        %v1971 = vand.u32 2147483647, %v1593
        %vm1972 = vcmp.eq.f32.partialorder %v1971, 8.507059e+37
        %v1973 = vand.u32 %v1593, 2147483648
        %v1974 = vor.u32 1.1754944e-38, %v1973
        %v1975 = vsel %vm1972, %v1974, %v1970
        %v1976 = vrcp.pop %v1596
        %v1977 = vmul.f32 %v1596, %v1976
        %v1978 = vsub.f32 1.0, %v1977
        %v1979 = vmul.f32 %v1976, %v1978
        %v1980 = vadd.f32 %v1976, %v1979
        %vm1981 = vweird.f32 %v1596
        %vm1982 = vweird.f32 %v1976
        %vm1983 = vmor %vm1981, %vm1982
        %v1984 = vsel %vm1983, %v1976, %v1980
        %v1985 = vand.u32 2147483647, %v1596
        %vm1986 = vcmp.eq.f32.partialorder %v1985, 8.507059e+37
        %v1987 = vand.u32 %v1596, 2147483648
        %v1988 = vor.u32 1.1754944e-38, %v1987
        %v1989 = vsel %vm1986, %v1988, %v1984
        %v1990 = vrcp.pop %v1599
        %v1991 = vmul.f32 %v1599, %v1990
        %v1992 = vsub.f32 1.0, %v1991
        %v1993 = vmul.f32 %v1990, %v1992
        %v1994 = vadd.f32 %v1990, %v1993
        %vm1995 = vweird.f32 %v1599
        %vm1996 = vweird.f32 %v1990
        %vm1997 = vmor %vm1995, %vm1996
        %v1998 = vsel %vm1997, %v1990, %v1994
        %v1999 = vand.u32 2147483647, %v1599
        %vm2000 = vcmp.eq.f32.partialorder %v1999, 8.507059e+37
        %v2001 = vand.u32 %v1599, 2147483648
        %v2002 = vor.u32 1.1754944e-38, %v2001
        %v2003 = vsel %vm2000, %v2002, %v1998
        %v2004 = vrcp.pop %v1602
        %v2005 = vmul.f32 %v1602, %v2004
        %v2006 = vsub.f32 1.0, %v2005
        %v2007 = vmul.f32 %v2004, %v2006
        %v2008 = vadd.f32 %v2004, %v2007
        %vm2009 = vweird.f32 %v1602
        %vm2010 = vweird.f32 %v2004
        %vm2011 = vmor %vm2009, %vm2010
        %v2012 = vsel %vm2011, %v2004, %v2008
        %v2013 = vand.u32 2147483647, %v1602
        %vm2014 = vcmp.eq.f32.partialorder %v2013, 8.507059e+37
        %v2015 = vand.u32 %v1602, 2147483648
        %v2016 = vor.u32 1.1754944e-38, %v2015
        %v2017 = vsel %vm2014, %v2016, %v2012
        %v2018 = vrcp.pop %v1605
        %v2019 = vmul.f32 %v1605, %v2018
        %v2020 = vsub.f32 1.0, %v2019
        %v2021 = vmul.f32 %v2018, %v2020
        %v2022 = vadd.f32 %v2018, %v2021
        %vm2023 = vweird.f32 %v1605
        %vm2024 = vweird.f32 %v2018
        %vm2025 = vmor %vm2023, %vm2024
        %v2026 = vsel %vm2025, %v2018, %v2022
        %v2027 = vand.u32 2147483647, %v1605
        %vm2028 = vcmp.eq.f32.partialorder %v2027, 8.507059e+37
        %v2029 = vand.u32 %v1605, 2147483648
        %v2030 = vor.u32 1.1754944e-38, %v2029
        %v2031 = vsel %vm2028, %v2030, %v2026
        %v2032 = vrcp.pop %v1608
        %v2033 = vmul.f32 %v1608, %v2032
        %v2034 = vsub.f32 1.0, %v2033
        %v2035 = vmul.f32 %v2032, %v2034
        %v2036 = vadd.f32 %v2032, %v2035
        %vm2037 = vweird.f32 %v1608
        %vm2038 = vweird.f32 %v2032
        %vm2039 = vmor %vm2037, %vm2038
        %v2040 = vsel %vm2039, %v2032, %v2036
        %v2041 = vand.u32 2147483647, %v1608
        %vm2042 = vcmp.eq.f32.partialorder %v2041, 8.507059e+37
        %v2043 = vand.u32 %v1608, 2147483648
        %v2044 = vor.u32 1.1754944e-38, %v2043
        %v2045 = vsel %vm2042, %v2044, %v2040
        %v2046 = vrcp.pop %v1611
        %v2047 = vmul.f32 %v1611, %v2046
        %v2048 = vsub.f32 1.0, %v2047
        %v2049 = vmul.f32 %v2046, %v2048
        %v2050 = vadd.f32 %v2046, %v2049
        %vm2051 = vweird.f32 %v1611
        %vm2052 = vweird.f32 %v2046
        %vm2053 = vmor %vm2051, %vm2052
        %v2054 = vsel %vm2053, %v2046, %v2050
        %v2055 = vand.u32 2147483647, %v1611
        %vm2056 = vcmp.eq.f32.partialorder %v2055, 8.507059e+37
        %v2057 = vand.u32 %v1611, 2147483648
        %v2058 = vor.u32 1.1754944e-38, %v2057
        %v2059 = vsel %vm2056, %v2058, %v2054
        %v2060 = vmul.f32 %v1452, %v1625
        %v2061 = vmul.f32 %v1453, %v1625
        %v2062 = vmul.f32 %v1454, %v1639
        %v2063 = vmul.f32 %v1455, %v1639
        %v2064 = vmul.f32 %v1456, %v1653
        %v2065 = vmul.f32 %v1457, %v1653
        %v2066 = vmul.f32 %v1458, %v1667
        %v2067 = vmul.f32 %v1459, %v1667
        %v2068 = vmul.f32 %v1460, %v1681
        %v2069 = vmul.f32 %v1461, %v1681
        %v2070 = vmul.f32 %v1462, %v1695
        %v2071 = vmul.f32 %v1463, %v1695
        %v2072 = vmul.f32 %v1464, %v1709
        %v2073 = vmul.f32 %v1465, %v1709
        %v2074 = vmul.f32 %v1466, %v1723
        %v2075 = vmul.f32 %v1467, %v1723
        %v2076 = vmul.f32 %v1468, %v1737
        %v2077 = vmul.f32 %v1469, %v1737
        %v2078 = vmul.f32 %v1470, %v1751
        %v2079 = vmul.f32 %v1471, %v1751
        %v2080 = vmul.f32 %v1472, %v1765
        %v2081 = vmul.f32 %v1473, %v1765
        %v2082 = vmul.f32 %v1474, %v1779
        %v2083 = vmul.f32 %v1475, %v1779
        %v2084 = vmul.f32 %v1476, %v1793
        %v2085 = vmul.f32 %v1477, %v1793
        %v2086 = vmul.f32 %v1478, %v1807
        %v2087 = vmul.f32 %v1479, %v1807
        %v2088 = vmul.f32 %v1480, %v1821
        %v2089 = vmul.f32 %v1481, %v1821
        %v2090 = vmul.f32 %v1482, %v1835
        %v2091 = vmul.f32 %v1483, %v1835
        %v2092 = vmul.f32 %v1484, %v1849
        %v2093 = vmul.f32 %v1485, %v1849
        %v2094 = vmul.f32 %v1486, %v1863
        %v2095 = vmul.f32 %v1487, %v1863
        %v2096 = vmul.f32 %v1488, %v1877
        %v2097 = vmul.f32 %v1489, %v1877
        %v2098 = vmul.f32 %v1490, %v1891
        %v2099 = vmul.f32 %v1491, %v1891
        %v2100 = vmul.f32 %v1492, %v1905
        %v2101 = vmul.f32 %v1493, %v1905
        %v2102 = vmul.f32 %v1494, %v1919
        %v2103 = vmul.f32 %v1495, %v1919
        %v2104 = vmul.f32 %v1496, %v1933
        %v2105 = vmul.f32 %v1497, %v1933
        %v2106 = vmul.f32 %v1498, %v1947
        %v2107 = vmul.f32 %v1499, %v1947
        %v2108 = vmul.f32 %v1500, %v1961
        %v2109 = vmul.f32 %v1501, %v1961
        %v2110 = vmul.f32 %v1502, %v1975
        %v2111 = vmul.f32 %v1503, %v1975
        %v2112 = vmul.f32 %v1504, %v1989
        %v2113 = vmul.f32 %v1505, %v1989
        %v2114 = vmul.f32 %v1506, %v2003
        %v2115 = vmul.f32 %v1507, %v2003
        %v2116 = vmul.f32 %v1508, %v2017
        %v2117 = vmul.f32 %v1509, %v2017
        %v2118 = vmul.f32 %v1510, %v2031
        %v2119 = vmul.f32 %v1511, %v2031
        %v2120 = vmul.f32 %v1512, %v2045
        %v2121 = vmul.f32 %v1513, %v2045
        %v2122 = vmul.f32 %v1514, %v2059
        %v2123 = vmul.f32 %v1515, %v2059
        %2124 = vmatpush.xpose.msra.mxu0 %v2090
        %2125 = vmatpush.xpose.msra.mxu0 %v2088
        %2126 = vmatpush.xpose.msra.mxu0 %v2086
        %2127 = vmatpush.xpose.msra.mxu0 %v2084
        %2128 = vmatpush.xpose.msra.mxu0 %v2082
        %2129 = vmatpush.xpose.msra.mxu0 %v2080
        %2130 = vmatpush.xpose.msra.mxu0 %v2078
        %2131 = vmatpush.xpose.msra.mxu0 %v2076
        %2132 = vmatpush.xpose.msra.mxu0 %v2074
        %2133 = vmatpush.xpose.msra.mxu0 %v2072
        %2134 = vmatpush.xpose.msra.mxu0 %v2070
        %2135 = vmatpush.xpose.msra.mxu0 %v2068
        %2136 = vmatpush.xpose.msra.mxu0 %v2066
        %2137 = vmatpush.xpose.msra.mxu0 %v2064
        %2138 = vmatpush.xpose.msra.mxu0 %v2062
        %2139 = vmatpush.xpose.msra.mxu0 %v2060
        %2140 = vmatmul.f32.gmra.mxu0 %v564
        %v2141 = vpop.f32.mrf.mxu0
        %v2142 = vadd.f32 0.0, %v2141
        %2143 = vdwg.mxu0
        %2144 = vmatpush.xpose.msra.mxu0 %v2091
        %2145 = vmatpush.xpose.msra.mxu0 %v2089
        %2146 = vmatpush.xpose.msra.mxu0 %v2087
        %2147 = vmatpush.xpose.msra.mxu0 %v2085
        %2148 = vmatpush.xpose.msra.mxu0 %v2083
        %2149 = vmatpush.xpose.msra.mxu0 %v2081
        %2150 = vmatpush.xpose.msra.mxu0 %v2079
        %2151 = vmatpush.xpose.msra.mxu0 %v2077
        %2152 = vmatpush.xpose.msra.mxu0 %v2075
        %2153 = vmatpush.xpose.msra.mxu0 %v2073
        %2154 = vmatpush.xpose.msra.mxu0 %v2071
        %2155 = vmatpush.xpose.msra.mxu0 %v2069
        %2156 = vmatpush.xpose.msra.mxu0 %v2067
        %2157 = vmatpush.xpose.msra.mxu0 %v2065
        %2158 = vmatpush.xpose.msra.mxu0 %v2063
        %2159 = vmatpush.xpose.msra.mxu0 %v2061
        %2160 = vmatmul.f32.gmra.mxu0 %v584
        %v2161 = vpop.f32.mrf.mxu0
        %v2162 = vadd.f32 %v2142, %v2161
        %2163 = vdwg.mxu0
        %2164 = vmatpush.xpose.msra.mxu0 %v2122
        %2165 = vmatpush.xpose.msra.mxu0 %v2120
        %2166 = vmatpush.xpose.msra.mxu0 %v2118
        %2167 = vmatpush.xpose.msra.mxu0 %v2116
        %2168 = vmatpush.xpose.msra.mxu0 %v2114
        %2169 = vmatpush.xpose.msra.mxu0 %v2112
        %2170 = vmatpush.xpose.msra.mxu0 %v2110
        %2171 = vmatpush.xpose.msra.mxu0 %v2108
        %2172 = vmatpush.xpose.msra.mxu0 %v2106
        %2173 = vmatpush.xpose.msra.mxu0 %v2104
        %2174 = vmatpush.xpose.msra.mxu0 %v2102
        %2175 = vmatpush.xpose.msra.mxu0 %v2100
        %2176 = vmatpush.xpose.msra.mxu0 %v2098
        %2177 = vmatpush.xpose.msra.mxu0 %v2096
        %2178 = vmatpush.xpose.msra.mxu0 %v2094
        %2179 = vmatpush.xpose.msra.mxu0 %v2092
        %2180 = vmatmul.f32.gmra.mxu0 %v564
        %v2181 = vpop.f32.mrf.mxu0
        %v2182 = vadd.f32 0.0, %v2181
        %2183 = vdwg.mxu0
        %2184 = vmatpush.xpose.msra.mxu0 %v2123
        %2185 = vmatpush.xpose.msra.mxu0 %v2121
        %2186 = vmatpush.xpose.msra.mxu0 %v2119
        %2187 = vmatpush.xpose.msra.mxu0 %v2117
        %2188 = vmatpush.xpose.msra.mxu0 %v2115
        %2189 = vmatpush.xpose.msra.mxu0 %v2113
        %2190 = vmatpush.xpose.msra.mxu0 %v2111
        %2191 = vmatpush.xpose.msra.mxu0 %v2109
        %2192 = vmatpush.xpose.msra.mxu0 %v2107
        %2193 = vmatpush.xpose.msra.mxu0 %v2105
        %2194 = vmatpush.xpose.msra.mxu0 %v2103
        %2195 = vmatpush.xpose.msra.mxu0 %v2101
        %2196 = vmatpush.xpose.msra.mxu0 %v2099
        %2197 = vmatpush.xpose.msra.mxu0 %v2097
        %2198 = vmatpush.xpose.msra.mxu0 %v2095
        %2199 = vmatpush.xpose.msra.mxu0 %v2093
        %2200 = vmatmul.f32.gmra.mxu0 %v584
        %v2201 = vpop.f32.mrf.mxu0
        %v2202 = vadd.f32 %v2182, %v2201
        %2203 = vdwg.mxu0
        %2204 = vst [vmem:[%s432] sm:$0xff] %v2162
        %2205 = vst [vmem:[%s432 + $0x8] sm:$0xff] %v2202
        %v2206 = vld [vmem:[%s8] sm:$0xff]
        %v2207 = vld [vmem:[%s9] sm:$0xff]
        %2209 = vset.pattern.permute.xlu0 0
        %2210 = vperm.xlu0 %2209, %v2207
        %v2211 = vpop.permute.xlu0 %2210
        %v2214 = vsel %vm442, %v2206, 0
        %2216 = vmatpush.msra.mxu0 0.0
        %2217 = vmatpush.msra.mxu0 0.0
        %2218 = vmatpush.msra.mxu0 0.0
        %2219 = vmatpush.msra.mxu0 0.0
        %2220 = vmatpush.msra.mxu0 0.0
        %2221 = vmatpush.msra.mxu0 0.0
        %2222 = vmatpush.msra.mxu0 0.0
        %2223 = vmatpush.msra.mxu0 0.0
        %2224 = vmatpush.msra.mxu0 0.0
        %2225 = vmatpush.msra.mxu0 0.0
        %2226 = vmatpush.msra.mxu0 0.0
        %2227 = vmatpush.msra.mxu0 0.0
        %2228 = vmatpush.msra.mxu0 0.0
        %2229 = vmatpush.msra.mxu0 0.0
        %2230 = vmatpush.msra.mxu0 0.0
        %2231 = vmatpush.msra.mxu0 %v2162
        %2232 = vmatmul.f32.gmra.mxu0 %v2214
        %v2233 = vpop.f32.mrf.mxu0
        %v2234 = vadd.f32 %v2211, %v2233
        %2235 = vdwg.mxu0
        %2236 = vmatpush.msra.mxu0 0.0
        %2237 = vmatpush.msra.mxu0 0.0
        %2238 = vmatpush.msra.mxu0 0.0
        %2239 = vmatpush.msra.mxu0 0.0
        %2240 = vmatpush.msra.mxu0 0.0
        %2241 = vmatpush.msra.mxu0 0.0
        %2242 = vmatpush.msra.mxu0 0.0
        %2243 = vmatpush.msra.mxu0 0.0
        %2244 = vmatpush.msra.mxu0 0.0
        %2245 = vmatpush.msra.mxu0 0.0
        %2246 = vmatpush.msra.mxu0 0.0
        %2247 = vmatpush.msra.mxu0 0.0
        %2248 = vmatpush.msra.mxu0 0.0
        %2249 = vmatpush.msra.mxu0 0.0
        %2250 = vmatpush.msra.mxu0 0.0
        %2251 = vmatpush.msra.mxu0 %v2202
        %2252 = vmatmul.f32.gmra.mxu0 %v2214
        %v2253 = vpop.f32.mrf.mxu0
        %v2254 = vadd.f32 %v2211, %v2253
        %2255 = vdwg.mxu0
        %v2256 = vadd.f32 %v433, %v2234
        %v2257 = vadd.f32 %v434, %v2254
        %2258 = vst [vmem:[%s425] sm:$0xff] %v2256
        %2259 = vst [vmem:[%s425 + $0x8] sm:$0xff] %v2257
        %s2260 = sand.u32 %s256, 1
        %s2261 = scalar_lea.sflag [#allocation4], %s2260
        %s2262 = sand.u32 %s256, 1
        %s2263 = smul.addr %s2262, 16
        %s2264 = scalar_lea.vmem [#allocation7], %s2263
        %s2265 = sand.u32 %s282, 1
        %s2266 = scalar_lea.sflag [#allocation9], %s2265
        %s2267 = sand.u32 %s282, 1
        %s2268 = smul.addr %s2267, 16
        %s2269 = scalar_lea.vmem [#allocation8], %s2268
        // Predicated region
        $region69: #{tpu_custom_call.1} parent=59 // pred_check
          %p2270 = pneg %p266
        $region70: #{tpu_custom_call.1} parent=59 // pred_check_branch
          %2272 = sbr.rel (%p2270) target = $region72
        $region71: #{tpu_custom_call.1} parent=59 // pred_region
          %2274 = vsyncadd %s2261, 0
          %s2275 = smul.addr %s33, 2
          %s2276 = smul.addr %s2275, 8
          %s2277 = scalar_lea.hbm %s10, %s2276
          %s2279 = sshll.u32 %s2264, 4
          %s2280 = int_to_ptr.vmem [resolvable:$true] %s2279
          %s2281 = sshll.u32 %s2277, 4
          %s2282 = int_to_ptr.hbm [resolvable:$true] %s2281
          %2284 = dma.vmem_to_hbm [thread:$0]  %s2280, 256, %s2282, %s2261
        $region72: #{tpu_custom_call.1} parent=59 // pred_fallthru
          _
        // Predicated region
        $region73: #{tpu_custom_call.1} parent=59 // pred_check
          %p2285 = pneg %p292
        $region74: #{tpu_custom_call.1} parent=59 // pred_check_branch
          %2287 = sbr.rel (%p2285) target = $region76
        $region75: #{tpu_custom_call.1} parent=59 // pred_region
          %2289 = vsyncadd %s2266, 0
          %s2290 = smul.addr %s33, 2
          %s2291 = smul.addr %s2290, 8
          %s2292 = scalar_lea.hbm %s11, %s2291
          %s2294 = sshll.u32 %s2269, 4
          %s2295 = int_to_ptr.vmem [resolvable:$true] %s2294
          %s2296 = sshll.u32 %s2292, 4
          %s2297 = int_to_ptr.hbm [resolvable:$true] %s2296
          %2299 = dma.vmem_to_hbm [thread:$0]  %s2295, 256, %s2297, %s2266
        $region76: #{tpu_custom_call.1} parent=59 // pred_fallthru
          _
      $region60: #{tpu_custom_call.1} parent=5 // pred_fallthru
        _
      %p2300 = scmp.le.s32.totalorder 2, %s28
      // Predicated region
      $region77: #{tpu_custom_call.1} parent=5 // pred_check
        %p2301 = pneg %p2300
      $region78: #{tpu_custom_call.1} parent=5 // pred_check_branch
        %2303 = sbr.rel (%p2301) target = $region80
      $region79: #{tpu_custom_call.1} parent=5 // pred_region
        %s2304 = ssub.s32 %s28, 2
        // Predicated region
        $region81: #{tpu_custom_call.1} parent=79 // pred_check
          %p2305 = pneg %p272
        $region82: #{tpu_custom_call.1} parent=79 // pred_check_branch
          %2307 = sbr.rel (%p2305) target = $region84
        $region83: #{tpu_custom_call.1} parent=79 // pred_region
          %s2308 = sand.u32 %s257, 1
          %s2309 = scalar_lea.sflag [#allocation4], %s2308
          %s2310 = sand.u32 %s257, 1
          %s2311 = smul.addr %s2310, 16
          %s2312 = scalar_lea.vmem [#allocation7], %s2311
          %2314 = dma.done %s2309, 256
        $region84: #{tpu_custom_call.1} parent=79 // pred_fallthru
          _
        // Predicated region
        $region85: #{tpu_custom_call.1} parent=79 // pred_check
          %p2315 = pneg %p298
        $region86: #{tpu_custom_call.1} parent=79 // pred_check_branch
          %2317 = sbr.rel (%p2315) target = $region88
        $region87: #{tpu_custom_call.1} parent=79 // pred_region
          %s2318 = sand.u32 %s283, 1
          %s2319 = scalar_lea.sflag [#allocation9], %s2318
          %s2320 = sand.u32 %s283, 1
          %s2321 = smul.addr %s2320, 16
          %s2322 = scalar_lea.vmem [#allocation8], %s2321
          %2324 = dma.done %s2319, 256
        $region88: #{tpu_custom_call.1} parent=79 // pred_fallthru
          _
      $region80: #{tpu_custom_call.1} parent=5 // pred_fallthru
        _
    $region6: #{tpu_custom_call.1} parent=1 // loop_footer
      %s32 = sadd.s32 1, %s28
    $region7: #{tpu_custom_call.1} parent=1 // loop_footer_branch
      %27 = sbr.rel target = $region3
    $region8: #{tpu_custom_call.1} parent=1 // loop_exit
      _
    %2325 = vsyncpa [#allocation3], 1
    %s2326 = scalar_lea.sflag [#allocation3], 1
    %2327 = vsyncpa %s2326, 1
    %2328 = vsyncpa [#allocation6], 1
    %2329 = vsyncpa [#allocation4], 1
    %s2330 = scalar_lea.sflag [#allocation4], 1
    %2331 = vsyncpa %s2330, 1
    %2332 = vsyncpa [#allocation9], 1
    %s2333 = scalar_lea.sflag [#allocation9], 1
    %2334 = vsyncpa %s2333, 1

</llo_original>
